<compile_context>
chip_gen: v6e
topology: v6e:2x2x1
jax: 0.10.0
libtpu: 0.0.40
codegen_flags: <defaults>
</compile_context>

<pallas_src>
from collections import namedtuple

import jax
import jax.numpy as jnp
import numpy as np
from jax import lax
from jax.experimental import pallas as pl
from jax.experimental.pallas import tpu as pltpu


AEQResult = namedtuple("AEQResult", ["out", "u", "e", "peak_distortion", "filter_taps"])


def _round_up(x, m):
    return ((x + m - 1) // m) * m


def _make_adaptive_kernel(L, chunk, lr, unroll):
    """Serial pilot-aided LMS recursion for one butterfly polarization pair.

    Per symbol j (local to the chunk), with 2L-lane rows:
      o    = sum(taps * ywin[j])      (complex, lane reduce)
      e    = pilot[j] - o
      u[j] = e * regwin[j]            (regwin = flip(conj(reg window)))
      taps += 2*lr*u[j-1]             (delayed update, block_size == 1)
    Only u is stored; out / e / peak_distortion / filter_taps / frozen taps are
    reconstructed outside the kernel (batched XLA).
    """
    two_lr = 2.0 * float(lr)
    L2 = 2 * L
    n_outer = chunk // unroll

    def kernel(ywr_ref, ywi_ref, rwr_ref, rwi_ref, plr_ref, pli_ref,
               u_r_ref, u_i_ref,
               taps_r_s, taps_i_s, upr_s, upi_s):
        c = pl.program_id(1)

        @pl.when(c == 0)
        def _init():
            # initial butterfly taps for this pol pair: center tap = 1 in the first row
            lane = lax.broadcasted_iota(jnp.int32, (1, L2), 1)
            taps_r_s[...] = jnp.where(lane == (L // 2), 1.0, 0.0).astype(taps_r_s.dtype)
            taps_i_s[...] = jnp.zeros_like(taps_i_s)
            upr_s[...] = jnp.zeros_like(upr_s)
            upi_s[...] = jnp.zeros_like(upi_s)

        def step(j, carry):
            tr, ti, upr, upi = carry
            # butterfly "valid" conv of this symbol's pre-gathered time-reversed window
            wr = ywr_ref[pl.ds(j, 1), :]                       # (1, 2L)
            wi = ywi_ref[pl.ds(j, 1), :]
            pr = tr * wr - ti * wi
            pm = tr * wi + ti * wr
            o_r = jnp.sum(pr, axis=1, keepdims=True)           # (1, 1), XLU lane reduce
            o_i = jnp.sum(pm, axis=1, keepdims=True)
            # error against the pilot symbol
            e_r = plr_ref[pl.ds(j, 1), :] - o_r                 # (1, 1)
            e_i = pli_ref[pl.ds(j, 1), :] - o_i
            # regression outer product u = e * flip(conj(reg window))
            rr = rwr_ref[pl.ds(j, 1), :]                        # (1, 2L)
            ri = rwi_ref[pl.ds(j, 1), :]
            u_r = e_r * rr - e_i * ri
            u_i = e_r * ri + e_i * rr
            u_r_ref[pl.ds(j, 1), :] = u_r
            u_i_ref[pl.ds(j, 1), :] = u_i
            # delayed LMS tap update: taps_{j+1} = taps_j + 2*lr*u_{j-1}
            tr = tr + two_lr * upr
            ti = ti + two_lr * upi
            return (tr, ti, u_r, u_i)

        def body(jj, carry):
            j0 = pl.multiple_of(jj * unroll, unroll)
            for t in range(unroll):                             # static unroll
                carry = step(j0 + t, carry)
            return carry

        carry0 = (taps_r_s[...], taps_i_s[...], upr_s[...], upi_s[...])
        tr, ti, upr, upi = lax.fori_loop(0, n_outer, body, carry0)

        # spill carries for the next chunk
        taps_r_s[...] = tr
        taps_i_s[...] = ti
        upr_s[...] = upr
        upi_s[...] = upi

    return kernel


def pilot_aeq_dp_forward(y, pilot_sequence, pilot_sequence_up, *, sps, lr,
                         filter_length, method="LMS", lmszf_weight=0.5,
                         chunk_symbols=256, unroll=8):
    """JAX/Pallas equivalent of PilotAEQ_DP.forward (defaults: LMS, block_size=1)."""
    # TODO(synk): correct_start_polarization (cross-correlation start alignment) is not
    #             reproduced; the input y is assumed to already be pilot-aligned.
    # TODO(synk): preeq_method/preeq_offset/preeq_lradjust, adaptive_lr and the ZFadv
    #             in-loop regression refresh (h2f + Butterfly2x2) are not implemented.
    y_cut = jnp.asarray(y, jnp.complex64)
    pilot = jnp.asarray(pilot_sequence, jnp.complex64)
    pilot_up = jnp.asarray(pilot_sequence_up, jnp.complex64)

    L = int(filter_length)
    sps = int(sps)
    assert unroll in (1, 2, 4, 8)
    eq_off = (L - 1) // 2 // sps
    assert eq_off >= 1
    num_samp = y_cut.shape[1]
    npil = pilot.shape[1]
    reg_len = pilot_up.shape[1]
    nu = npil - 2 * eq_off            # rows allocated for u / filter_taps
    nup = nu - 1                      # symbols with an adaptive update
    nsym = (num_samp - L) // sps      # total equalized symbols
    nloop = len(range(L, num_samp - 1, sps))
    assert nloop == nsym, "choose sizes so the symbol loop fills `out` exactly"
    n_adapt = min(nup, nsym)
    assert n_adapt >= 1
    nsamp_k = L + (n_adapt - 1) * sps
    assert reg_len >= nsamp_k and num_samp >= nsamp_k

    # regression-sequence selection (matches the torch module, no pre-equalization)
    if method == "LMS":
        reg = y_cut[:, :reg_len]
    elif method in ("ZF", "ZFadv"):
        reg = jnp.conj(pilot_up)
    elif method == "LMSZF":
        w = jnp.asarray(lmszf_weight, jnp.float32)
        reg = jnp.sqrt(w) * y_cut[:, :reg_len] + jnp.sqrt(1.0 - w) * jnp.conj(pilot_up)
    else:
        raise ValueError(method)

    f32, c64 = jnp.float32, jnp.complex64
    L2 = 2 * L
    two_lr = 2.0 * float(lr)

    chunk = _round_up(min(int(chunk_symbols), _round_up(n_adapt, 8)), 8)
    n_chunks = (n_adapt + chunk - 1) // chunk
    n_pad = n_chunks * chunk

    # ---- batched pre-gather of per-symbol windows (lane-dense, time-reversed) -----
    # k_i = L + i*sps; widx[i, t] = k_i - 1 - t  (time-reversed window indices)
    widx = (L - 1 + sps * jnp.arange(n_adapt))[:, None] - jnp.arange(L)[None, :]
    w0, w1 = y_cut[0][widx], y_cut[1][widx]                     # (n_adapt, L)
    ywin = jnp.stack([jnp.concatenate([w0, w1], axis=1),        # pol pair 0: rows (0,1)
                      jnp.concatenate([w1, w0], axis=1)], 0)    # pol pair 1: rows (2,3)
    regc = jnp.conj(reg)
    r0, r1 = regc[0][widx], regc[1][widx]
    rwin = jnp.stack([jnp.concatenate([r0, r1], axis=1),
                      jnp.concatenate([r1, r0], axis=1)], 0)    # (2, n_adapt, 2L)
    pil_a = pilot[:, eq_off:eq_off + n_adapt]                   # (2, n_adapt)

    pad = n_pad - n_adapt
    ywin_p = jnp.pad(ywin, ((0, 0), (0, pad), (0, 0)))          # zero pad -> tail is a no-op
    rwin_p = jnp.pad(rwin, ((0, 0), (0, pad), (0, 0)))
    pil_p = jnp.pad(pil_a, ((0, 0), (0, pad)))[..., None]       # (2, n_pad, 1)

    ywr, ywi = jnp.real(ywin_p).astype(f32), jnp.imag(ywin_p).astype(f32)
    rwr, rwi = jnp.real(rwin_p).astype(f32), jnp.imag(rwin_p).astype(f32)
    plr, pli = jnp.real(pil_p).astype(f32), jnp.imag(pil_p).astype(f32)

    kernel = _make_adaptive_kernel(L, chunk, float(lr), unroll)

    win_spec = pl.BlockSpec((None, chunk, L2), lambda p, c: (p, c, 0))
    pil_spec = pl.BlockSpec((None, chunk, 1), lambda p, c: (p, c, 0))
    u_spec = pl.BlockSpec((None, chunk, L2), lambda p, c: (p, c, 0))

    u_re, u_im = pl.pallas_call(
        kernel,
        out_shape=(jax.ShapeDtypeStruct((2, n_pad, L2), f32),
                   jax.ShapeDtypeStruct((2, n_pad, L2), f32)),
        grid_spec=pltpu.PrefetchScalarGridSpec(
            num_scalar_prefetch=0,
            grid=(2, n_chunks),               # pol pair (parallel) x chunk (sequential)
            in_specs=[win_spec, win_spec, win_spec, win_spec, pil_spec, pil_spec],
            out_specs=[u_spec, u_spec],
            scratch_shapes=[pltpu.VMEM((1, L2), f32) for _ in range(4)],
        ),
        compiler_params=pltpu.CompilerParams(
            dimension_semantics=("parallel", "arbitrary"),
            vmem_limit_bytes=48 * 1024 * 1024,
        ),
    )(ywr, ywi, rwr, rwi, plr, pli)

    # ---- batched (fully parallel) reconstruction of the remaining results --------
    u_pair = (u_re + 1j * u_im)[:, :n_adapt, :].astype(c64)     # (2, n_adapt, 2L)

    taps0_pair = jnp.zeros((L2,), c64).at[L // 2].set(1.0)
    S = jnp.cumsum(u_pair, axis=1)                              # S[:, i] = sum_{j<=i} u_j
    zero1 = jnp.zeros((2, 1, L2), c64)
    S1 = jnp.concatenate([zero1, S[:, :n_adapt - 1]], axis=1)   # sum_{j<=i-1}
    if n_adapt >= 2:
        S2 = jnp.concatenate([zero1, zero1, S[:, :n_adapt - 2]], axis=1)  # sum_{j<=i-2}
    else:
        S2 = jnp.zeros_like(S)

    ft_pair = taps0_pair[None, None, :] + two_lr * S1           # filter_taps at symbol i
    taps_used = taps0_pair[None, None, :] + two_lr * S2         # taps used to compute out_i

    out_adapt = jnp.einsum("pnk,pnk->pn", taps_used, ywin)      # (2, n_adapt)
    e_pair = pil_a - out_adapt

    two_eq = 2 * eq_off
    pidx = jnp.arange(n_adapt)[:, None] + jnp.arange(two_eq)[None, :]
    pmean = jnp.mean(jnp.conj(pilot)[:, pidx], axis=2)          # sliding mean of conj(pilot)
    pd_pair = e_pair * pmean

    u4 = u_pair.reshape(2, n_adapt, 2, L).transpose(0, 2, 1, 3).reshape(4, n_adapt, L)
    ft4 = ft_pair.reshape(2, n_adapt, 2, L).transpose(0, 2, 1, 3).reshape(4, n_adapt, L)
    u_full = jnp.zeros((4, nu, L), c64).at[:, :n_adapt, :].set(u4)
    ft_full = jnp.zeros((4, nu, L), c64).at[:, :n_adapt, :].set(ft4)

    e4 = jnp.stack([e_pair[0], e_pair[0], e_pair[1], e_pair[1]], axis=0)
    pd4 = jnp.stack([pd_pair[0], pd_pair[0], pd_pair[1], pd_pair[1]], axis=0)
    e_full = jnp.zeros((4, nsym), c64).at[:, :n_adapt].set(e4)
    pd_full = jnp.zeros((4, nsym), c64).at[:, :n_adapt].set(pd4)

    # ---- frozen-tap tail (i >= n_adapt): no serial dependency -> one batched einsum
    n_tail = nsym - n_adapt
    if n_tail > 0:
        if n_adapt >= 2:
            frozen_pair = taps0_pair[None, :] + two_lr * S[:, n_adapt - 2, :]
        else:
            frozen_pair = jnp.broadcast_to(taps0_pair[None, :], (2, L2))
        tidx = (L - 1 + sps * (n_adapt + jnp.arange(n_tail)))[:, None] - jnp.arange(L)[None, :]
        w0t, w1t = y_cut[0][tidx], y_cut[1][tidx]
        wtail = jnp.stack([jnp.concatenate([w0t, w1t], axis=1),
                           jnp.concatenate([w1t, w0t], axis=1)], 0)   # (2, n_tail, 2L)
        out_tail = jnp.einsum("pnk,pk->pn", wtail, frozen_pair)
        out_c = jnp.concatenate([out_adapt, out_tail], axis=1)
    else:
        out_c = out_adapt

    # the reference module hard-codes a 100-sample zero prefix on `out`
    out_full = jnp.concatenate([jnp.zeros((2, 100), c64), out_c], axis=1)
    return AEQResult(out_full, u_full, e_full, pd_full, ft_full)


def _reference_forward(y_cut, pilot, pilot_up, sps, lr, L, method="LMS"):
    """Pure-numpy transcription of PilotAEQ_DP.forward (LMS path, defaults)."""
    y_cut = np.asarray(y_cut, np.complex64)
    pilot = np.asarray(pilot, np.complex64)
    pilot_up = np.asarray(pilot_up, np.complex64)
    eq_off = (L - 1) // 2 // sps
    num_samp = y_cut.shape[1]
    npil = pilot.shape[1]
    nu = npil - 2 * eq_off
    ncols = (num_samp - L) // sps
    u = np.zeros((4, nu, L), np.complex64)
    ft = np.zeros((4, nu, L), np.complex64)
    e = np.zeros((4, ncols), np.complex64)
    pd = np.zeros((4, ncols), np.complex64)
    out = np.zeros((2, ncols), np.complex64)
    taps = np.zeros((4, L), np.complex64)
    taps[0, L // 2] = 1.0
    taps[2, L // 2] = 1.0
    reg = y_cut[:, :pilot_up.shape[1]].copy()           # LMS
    for i, k in enumerate(range(L, num_samp - 1, sps)):
        wrev = y_cut[:, k - L:k][:, ::-1]
        o0 = np.sum(taps[0] * wrev[0]) + np.sum(taps[1] * wrev[1])
        o1 = np.sum(taps[2] * wrev[1]) + np.sum(taps[3] * wrev[0])
        out[:, i] = (o0, o1)
        if i + 2 * eq_off + 1 < npil:
            regwin = reg[:, k - L:k]
            e0 = pilot[0, eq_off + i] - o0
            e1 = pilot[1, eq_off + i] - o1
            u[0, i] = e0 * np.conj(regwin[0])[::-1]
            u[1, i] = e0 * np.conj(regwin[1])[::-1]
            u[2, i] = e1 * np.conj(regwin[1])[::-1]
            u[3, i] = e1 * np.conj(regwin[0])[::-1]
            if i > 0:
                taps = taps + 2 * lr * u[:, i - 1, :]
            ft[:, i] = taps
            e[:, i] = (e0, e0, e1, e1)
            pseg = np.conj(pilot[[0, 0, 1, 1], i:i + 2 * eq_off])
            pd[:, i] = np.mean(e[:, i][:, None] * pseg, axis=1)
    out_full = np.concatenate([np.zeros((2, 100), np.complex64), out], axis=1)
    return out_full, u, e, pd, ft


if __name__ == "__main__":
    key = jax.random.PRNGKey(0)
    k1, k2, k3 = jax.random.split(key, 3)

    SPS = 2
    FILTER_LEN = 11
    N_PILOT = 32
    NUM_SAMP = 91
    LR = 5e-3

    # deterministic QPSK dual-pol pilot sequence (2, 32) and zero-stuffed upsampling (2, 64)
    bits = jax.random.bernoulli(k1, 0.5, (2, 2, N_PILOT)).astype(jnp.float32)
    pilot = (((2.0 * bits[0] - 1.0) + 1j * (2.0 * bits[1] - 1.0)) / jnp.sqrt(2.0)).astype(jnp.complex64)
    pilot_up = jnp.zeros((2, N_PILOT * SPS), jnp.complex64).at[:, ::SPS].set(pilot)

    # received dual-pol signal (2, 91): upsampled pilot + small noise
    noise = (jax.random.normal(k2, (2, NUM_SAMP)) +
             1j * jax.random.normal(k3, (2, NUM_SAMP))).astype(jnp.complex64)
    y = jnp.zeros((2, NUM_SAMP), jnp.complex64).at[:, :pilot_up.shape[1]].set(pilot_up)
    y = y + 0.05 * noise

    res = pilot_aeq_dp_forward(y, pilot, pilot_up, sps=SPS, lr=LR,
                               filter_length=FILTER_LEN, method="LMS")
    out = jax.block_until_ready(res.out)

    ref_out, ref_u, ref_e, ref_pd, ref_ft = _reference_forward(
        np.asarray(y), np.asarray(pilot), np.asarray(pilot_up), SPS, LR, FILTER_LEN)
    np.testing.assert_allclose(np.asarray(res.out), ref_out, rtol=2e-3, atol=2e-3)
    np.testing.assert_allclose(np.asarray(res.u), ref_u, rtol=2e-3, atol=2e-3)
    np.testing.assert_allclose(np.asarray(res.e), ref_e, rtol=2e-3, atol=2e-3)
    np.testing.assert_allclose(np.asarray(res.peak_distortion), ref_pd, rtol=2e-3, atol=2e-3)
    np.testing.assert_allclose(np.asarray(res.filter_taps), ref_ft, rtol=2e-3, atol=2e-3)

    print("KERNEL_OK")
</pallas_src>

<mosaic_0001>
module attributes {stable_mosaic.version = 11 : i64} {
  func.func @kernel(%arg0: i32, %arg1: i32, %arg2: memref<1x32x22xf32, #tpu.memory_space<vmem>>, %arg3: memref<1x32x22xf32, #tpu.memory_space<vmem>>, %arg4: memref<1x32x22xf32, #tpu.memory_space<vmem>>, %arg5: memref<1x32x22xf32, #tpu.memory_space<vmem>>, %arg6: memref<1x32x1xf32, #tpu.memory_space<vmem>>, %arg7: memref<1x32x1xf32, #tpu.memory_space<vmem>>, %arg8: memref<1x32x22xf32, #tpu.memory_space<vmem>>, %arg9: memref<1x32x22xf32, #tpu.memory_space<vmem>>, %arg10: memref<1x22xf32, #tpu.memory_space<vmem>>, %arg11: memref<1x22xf32, #tpu.memory_space<vmem>>, %arg12: memref<1x22xf32, #tpu.memory_space<vmem>>, %arg13: memref<1x22xf32, #tpu.memory_space<vmem>>) attributes {dimension_semantics = [#tpu.dimension_semantics<parallel>, #tpu.dimension_semantics<arbitrary>], iteration_bounds = array<i64: 2, 1>, scalar_prefetch = 0 : i64, scratch_operands = 4 : i64, tpu.core_type = #tpu.core_type<tc>, window_params = [{transform_indices = @transform_0, window_bounds = array<i64: 1, 32, 22>}, {transform_indices = @transform_1, window_bounds = array<i64: 1, 32, 22>}, {transform_indices = @transform_2, window_bounds = array<i64: 1, 32, 22>}, {transform_indices = @transform_3, window_bounds = array<i64: 1, 32, 22>}, {transform_indices = @transform_4, window_bounds = array<i64: 1, 32, 1>}, {transform_indices = @transform_5, window_bounds = array<i64: 1, 32, 1>}, {transform_indices = @transform_6, window_bounds = array<i64: 1, 32, 22>}, {transform_indices = @transform_7, window_bounds = array<i64: 1, 32, 22>}]} {
    %c0_i32 = arith.constant 0 : i32
    %0 = arith.cmpi eq, %arg1, %c0_i32 : i32
    %1 = arith.extui %0 : i1 to i32
    %c0_i32_0 = arith.constant 0 : i32
    %2 = arith.cmpi ne, %1, %c0_i32_0 : i32
    scf.if %2 {
      %13 = tpu.iota {dimensions = array<i32: 1>} : vector<1x22xi32>
      %c5_i32 = arith.constant 5 : i32
      %14 = vector.broadcast %c5_i32 : i32 to vector<1x22xi32>
      %15 = arith.cmpi eq, %13, %14 : vector<1x22xi32>
      %cst = arith.constant 1.000000e+00 : f32
      %cst_18 = arith.constant 0.000000e+00 : f32
      %16 = vector.broadcast %cst : f32 to vector<1x22xf32>
      %17 = vector.broadcast %cst_18 : f32 to vector<1x22xf32>
      %18 = arith.select %15, %16, %17 : vector<1x22xi1>, vector<1x22xf32>
      %c0_19 = arith.constant 0 : index
      %c0_20 = arith.constant 0 : index
      %19 = vector.load %arg10[%c0_19, %c0_20] : memref<1x22xf32, #tpu.memory_space<vmem>>, vector<1x22xf32>
      tpu.vector_store %arg10[%c0_19, %c0_20], %18 {strides = array<i32>} : memref<1x22xf32, #tpu.memory_space<vmem>>, vector<1x22xf32>,
      %cst_21 = arith.constant 0.000000e+00 : f32
      %20 = vector.broadcast %cst_21 : f32 to vector<1x22xf32>
      %c0_22 = arith.constant 0 : index
      %c0_23 = arith.constant 0 : index
      %21 = vector.load %arg11[%c0_22, %c0_23] : memref<1x22xf32, #tpu.memory_space<vmem>>, vector<1x22xf32>
      tpu.vector_store %arg11[%c0_22, %c0_23], %20 {strides = array<i32>} : memref<1x22xf32, #tpu.memory_space<vmem>>, vector<1x22xf32>,
      %cst_24 = arith.constant 0.000000e+00 : f32
      %22 = vector.broadcast %cst_24 : f32 to vector<1x22xf32>
      %c0_25 = arith.constant 0 : index
      %c0_26 = arith.constant 0 : index
      %23 = vector.load %arg12[%c0_25, %c0_26] : memref<1x22xf32, #tpu.memory_space<vmem>>, vector<1x22xf32>
      tpu.vector_store %arg12[%c0_25, %c0_26], %22 {strides = array<i32>} : memref<1x22xf32, #tpu.memory_space<vmem>>, vector<1x22xf32>,
      %cst_27 = arith.constant 0.000000e+00 : f32
      %24 = vector.broadcast %cst_27 : f32 to vector<1x22xf32>
      %c0_28 = arith.constant 0 : index
      %c0_29 = arith.constant 0 : index
      %25 = vector.load %arg13[%c0_28, %c0_29] : memref<1x22xf32, #tpu.memory_space<vmem>>, vector<1x22xf32>
      tpu.vector_store %arg13[%c0_28, %c0_29], %24 {strides = array<i32>} : memref<1x22xf32, #tpu.memory_space<vmem>>, vector<1x22xf32>,
    } else {
    }
    %c0 = arith.constant 0 : index
    %c0_1 = arith.constant 0 : index
    %3 = vector.load %arg10[%c0, %c0_1] : memref<1x22xf32, #tpu.memory_space<vmem>>, vector<1x22xf32>
    %c0_2 = arith.constant 0 : index
    %c0_3 = arith.constant 0 : index
    %4 = vector.load %arg11[%c0_2, %c0_3] : memref<1x22xf32, #tpu.memory_space<vmem>>, vector<1x22xf32>
    %c0_4 = arith.constant 0 : index
    %c0_5 = arith.constant 0 : index
    %5 = vector.load %arg12[%c0_4, %c0_5] : memref<1x22xf32, #tpu.memory_space<vmem>>, vector<1x22xf32>
    %c0_6 = arith.constant 0 : index
    %c0_7 = arith.constant 0 : index
    %6 = vector.load %arg13[%c0_6, %c0_7] : memref<1x22xf32, #tpu.memory_space<vmem>>, vector<1x22xf32>
    %c0_i32_8 = arith.constant 0 : i32
    %c4_i32 = arith.constant 4 : i32
    %7 = arith.addi %c0_i32_8, %c4_i32 : i32
    %c1_i32 = arith.constant 1 : i32
    %8:4 = scf.for %arg14 = %c0_i32_8 to %7 step %c1_i32 iter_args(%arg15 = %3, %arg16 = %4, %arg17 = %5, %arg18 = %6) -> (vector<1x22xf32>, vector<1x22xf32>, vector<1x22xf32>, vector<1x22xf32>)  : i32 {
      %c8_i32 = arith.constant 8 : i32
      %13 = arith.muli %arg14, %c8_i32 : i32
      %14 = tpu.assume_multiple %13, 8 : i32
      %c0_i32_18 = arith.constant 0 : i32
      %15 = arith.addi %14, %c0_i32_18 : i32
      %c0_19 = arith.constant 0 : index
      %16 = arith.index_cast %15 : i32 to index
      %c0_20 = arith.constant 0 : index
      %17 = vector.load %arg2[%c0_19, %16, %c0_20] : memref<1x32x22xf32, #tpu.memory_space<vmem>>, vector<1x1x22xf32>
      %18 = vector.shape_cast %17 : vector<1x1x22xf32> to vector<1x22xf32>
      %c0_21 = arith.constant 0 : index
      %19 = arith.index_cast %15 : i32 to index
      %c0_22 = arith.constant 0 : index
      %20 = vector.load %arg3[%c0_21, %19, %c0_22] : memref<1x32x22xf32, #tpu.memory_space<vmem>>, vector<1x1x22xf32>
      %21 = vector.shape_cast %20 : vector<1x1x22xf32> to vector<1x22xf32>
      %22 = arith.mulf %arg15, %18 : vector<1x22xf32>
      %23 = arith.mulf %arg16, %21 : vector<1x22xf32>
      %24 = arith.subf %22, %23 : vector<1x22xf32>
      %25 = arith.mulf %arg15, %21 : vector<1x22xf32>
      %26 = arith.mulf %arg16, %18 : vector<1x22xf32>
      %27 = arith.addf %25, %26 : vector<1x22xf32>
      %cst = arith.constant dense<0.000000e+00> : vector<1xf32>
      %28 = vector.multi_reduction <add>, %24, %cst [1] : vector<1x22xf32> to vector<1xf32>
      %29 = vector.shape_cast %28 : vector<1xf32> to vector<1x1xf32>
      %cst_23 = arith.constant dense<0.000000e+00> : vector<1xf32>
      %30 = vector.multi_reduction <add>, %27, %cst_23 [1] : vector<1x22xf32> to vector<1xf32>
      %31 = vector.shape_cast %30 : vector<1xf32> to vector<1x1xf32>
      %c0_24 = arith.constant 0 : index
      %32 = arith.index_cast %15 : i32 to index
      %c0_25 = arith.constant 0 : index
      %33 = vector.load %arg6[%c0_24, %32, %c0_25] : memref<1x32x1xf32, #tpu.memory_space<vmem>>, vector<1x1x1xf32>
      %34 = vector.shape_cast %33 : vector<1x1x1xf32> to vector<1x1xf32>
      %35 = arith.subf %34, %29 : vector<1x1xf32>
      %c0_26 = arith.constant 0 : index
      %36 = arith.index_cast %15 : i32 to index
      %c0_27 = arith.constant 0 : index
      %37 = vector.load %arg7[%c0_26, %36, %c0_27] : memref<1x32x1xf32, #tpu.memory_space<vmem>>, vector<1x1x1xf32>
      %38 = vector.shape_cast %37 : vector<1x1x1xf32> to vector<1x1xf32>
      %39 = arith.subf %38, %31 : vector<1x1xf32>
      %c0_28 = arith.constant 0 : index
      %40 = arith.index_cast %15 : i32 to index
      %c0_29 = arith.constant 0 : index
      %41 = vector.load %arg4[%c0_28, %40, %c0_29] : memref<1x32x22xf32, #tpu.memory_space<vmem>>, vector<1x1x22xf32>
      %42 = vector.shape_cast %41 : vector<1x1x22xf32> to vector<1x22xf32>
      %c0_30 = arith.constant 0 : index
      %43 = arith.index_cast %15 : i32 to index
      %c0_31 = arith.constant 0 : index
      %44 = vector.load %arg5[%c0_30, %43, %c0_31] : memref<1x32x22xf32, #tpu.memory_space<vmem>>, vector<1x1x22xf32>
      %45 = vector.shape_cast %44 : vector<1x1x22xf32> to vector<1x22xf32>
      %46 = vector.broadcast %35 : vector<1x1xf32> to vector<1x22xf32>
      %47 = arith.mulf %46, %42 : vector<1x22xf32>
      %48 = vector.broadcast %39 : vector<1x1xf32> to vector<1x22xf32>
      %49 = arith.mulf %48, %45 : vector<1x22xf32>
      %50 = arith.subf %47, %49 : vector<1x22xf32>
      %51 = vector.broadcast %35 : vector<1x1xf32> to vector<1x22xf32>
      %52 = arith.mulf %51, %45 : vector<1x22xf32>
      %53 = vector.broadcast %39 : vector<1x1xf32> to vector<1x22xf32>
      %54 = arith.mulf %53, %42 : vector<1x22xf32>
      %55 = arith.addf %52, %54 : vector<1x22xf32>
      %c0_32 = arith.constant 0 : index
      %56 = arith.index_cast %15 : i32 to index
      %c0_33 = arith.constant 0 : index
      %57 = vector.load %arg8[%c0_32, %56, %c0_33] : memref<1x32x22xf32, #tpu.memory_space<vmem>>, vector<1x1x22xf32>
      %58 = vector.shape_cast %57 : vector<1x1x22xf32> to vector<1x22xf32>
      %59 = vector.shape_cast %50 : vector<1x22xf32> to vector<1x1x22xf32>
      tpu.vector_store %arg8[%c0_32, %56, %c0_33], %59 {strides = array<i32>} : memref<1x32x22xf32, #tpu.memory_space<vmem>>, vector<1x1x22xf32>,
      %c0_34 = arith.constant 0 : index
      %60 = arith.index_cast %15 : i32 to index
      %c0_35 = arith.constant 0 : index
      %61 = vector.load %arg9[%c0_34, %60, %c0_35] : memref<1x32x22xf32, #tpu.memory_space<vmem>>, vector<1x1x22xf32>
      %62 = vector.shape_cast %61 : vector<1x1x22xf32> to vector<1x22xf32>
      %63 = vector.shape_cast %55 : vector<1x22xf32> to vector<1x1x22xf32>
      tpu.vector_store %arg9[%c0_34, %60, %c0_35], %63 {strides = array<i32>} : memref<1x32x22xf32, #tpu.memory_space<vmem>>, vector<1x1x22xf32>,
      %cst_36 = arith.constant 0.00999999977 : f32
      %64 = vector.broadcast %cst_36 : f32 to vector<1x22xf32>
      %65 = arith.mulf %64, %arg17 : vector<1x22xf32>
      %66 = arith.addf %arg15, %65 : vector<1x22xf32>
      %cst_37 = arith.constant 0.00999999977 : f32
      %67 = vector.broadcast %cst_37 : f32 to vector<1x22xf32>
      %68 = arith.mulf %67, %arg18 : vector<1x22xf32>
      %69 = arith.addf %arg16, %68 : vector<1x22xf32>
      %c1_i32_38 = arith.constant 1 : i32
      %70 = arith.addi %14, %c1_i32_38 : i32
      %c0_39 = arith.constant 0 : index
      %71 = arith.index_cast %70 : i32 to index
      %c0_40 = arith.constant 0 : index
      %72 = vector.load %arg2[%c0_39, %71, %c0_40] : memref<1x32x22xf32, #tpu.memory_space<vmem>>, vector<1x1x22xf32>
      %73 = vector.shape_cast %72 : vector<1x1x22xf32> to vector<1x22xf32>
      %c0_41 = arith.constant 0 : index
      %74 = arith.index_cast %70 : i32 to index
      %c0_42 = arith.constant 0 : index
      %75 = vector.load %arg3[%c0_41, %74, %c0_42] : memref<1x32x22xf32, #tpu.memory_space<vmem>>, vector<1x1x22xf32>
      %76 = vector.shape_cast %75 : vector<1x1x22xf32> to vector<1x22xf32>
      %77 = arith.mulf %66, %73 : vector<1x22xf32>
      %78 = arith.mulf %69, %76 : vector<1x22xf32>
      %79 = arith.subf %77, %78 : vector<1x22xf32>
      %80 = arith.mulf %66, %76 : vector<1x22xf32>
      %81 = arith.mulf %69, %73 : vector<1x22xf32>
      %82 = arith.addf %80, %81 : vector<1x22xf32>
      %cst_43 = arith.constant dense<0.000000e+00> : vector<1xf32>
      %83 = vector.multi_reduction <add>, %79, %cst_43 [1] : vector<1x22xf32> to vector<1xf32>
      %84 = vector.shape_cast %83 : vector<1xf32> to vector<1x1xf32>
      %cst_44 = arith.constant dense<0.000000e+00> : vector<1xf32>
      %85 = vector.multi_reduction <add>, %82, %cst_44 [1] : vector<1x22xf32> to vector<1xf32>
      %86 = vector.shape_cast %85 : vector<1xf32> to vector<1x1xf32>
      %c0_45 = arith.constant 0 : index
      %87 = arith.index_cast %70 : i32 to index
      %c0_46 = arith.constant 0 : index
      %88 = vector.load %arg6[%c0_45, %87, %c0_46] : memref<1x32x1xf32, #tpu.memory_space<vmem>>, vector<1x1x1xf32>
      %89 = vector.shape_cast %88 : vector<1x1x1xf32> to vector<1x1xf32>
      %90 = arith.subf %89, %84 : vector<1x1xf32>
      %c0_47 = arith.constant 0 : index
      %91 = arith.index_cast %70 : i32 to index
      %c0_48 = arith.constant 0 : index
      %92 = vector.load %arg7[%c0_47, %91, %c0_48] : memref<1x32x1xf32, #tpu.memory_space<vmem>>, vector<1x1x1xf32>
      %93 = vector.shape_cast %92 : vector<1x1x1xf32> to vector<1x1xf32>
      %94 = arith.subf %93, %86 : vector<1x1xf32>
      %c0_49 = arith.constant 0 : index
      %95 = arith.index_cast %70 : i32 to index
      %c0_50 = arith.constant 0 : index
      %96 = vector.load %arg4[%c0_49, %95, %c0_50] : memref<1x32x22xf32, #tpu.memory_space<vmem>>, vector<1x1x22xf32>
      %97 = vector.shape_cast %96 : vector<1x1x22xf32> to vector<1x22xf32>
      %c0_51 = arith.constant 0 : index
      %98 = arith.index_cast %70 : i32 to index
      %c0_52 = arith.constant 0 : index
      %99 = vector.load %arg5[%c0_51, %98, %c0_52] : memref<1x32x22xf32, #tpu.memory_space<vmem>>, vector<1x1x22xf32>
      %100 = vector.shape_cast %99 : vector<1x1x22xf32> to vector<1x22xf32>
      %101 = vector.broadcast %90 : vector<1x1xf32> to vector<1x22xf32>
      %102 = arith.mulf %101, %97 : vector<1x22xf32>
      %103 = vector.broadcast %94 : vector<1x1xf32> to vector<1x22xf32>
      %104 = arith.mulf %103, %100 : vector<1x22xf32>
      %105 = arith.subf %102, %104 : vector<1x22xf32>
      %106 = vector.broadcast %90 : vector<1x1xf32> to vector<1x22xf32>
      %107 = arith.mulf %106, %100 : vector<1x22xf32>
      %108 = vector.broadcast %94 : vector<1x1xf32> to vector<1x22xf32>
      %109 = arith.mulf %108, %97 : vector<1x22xf32>
      %110 = arith.addf %107, %109 : vector<1x22xf32>
      %c0_53 = arith.constant 0 : index
      %111 = arith.index_cast %70 : i32 to index
      %c0_54 = arith.constant 0 : index
      %112 = vector.load %arg8[%c0_53, %111, %c0_54] : memref<1x32x22xf32, #tpu.memory_space<vmem>>, vector<1x1x22xf32>
      %113 = vector.shape_cast %112 : vector<1x1x22xf32> to vector<1x22xf32>
      %114 = vector.shape_cast %105 : vector<1x22xf32> to vector<1x1x22xf32>
      tpu.vector_store %arg8[%c0_53, %111, %c0_54], %114 {strides = array<i32>} : memref<1x32x22xf32, #tpu.memory_space<vmem>>, vector<1x1x22xf32>,
      %c0_55 = arith.constant 0 : index
      %115 = arith.index_cast %70 : i32 to index
      %c0_56 = arith.constant 0 : index
      %116 = vector.load %arg9[%c0_55, %115, %c0_56] : memref<1x32x22xf32, #tpu.memory_space<vmem>>, vector<1x1x22xf32>
      %117 = vector.shape_cast %116 : vector<1x1x22xf32> to vector<1x22xf32>
      %118 = vector.shape_cast %110 : vector<1x22xf32> to vector<1x1x22xf32>
      tpu.vector_store %arg9[%c0_55, %115, %c0_56], %118 {strides = array<i32>} : memref<1x32x22xf32, #tpu.memory_space<vmem>>, vector<1x1x22xf32>,
      %cst_57 = arith.constant 0.00999999977 : f32
      %119 = vector.broadcast %cst_57 : f32 to vector<1x22xf32>
      %120 = arith.mulf %119, %50 : vector<1x22xf32>
      %121 = arith.addf %66, %120 : vector<1x22xf32>
      %cst_58 = arith.constant 0.00999999977 : f32
      %122 = vector.broadcast %cst_58 : f32 to vector<1x22xf32>
      %123 = arith.mulf %122, %55 : vector<1x22xf32>
      %124 = arith.addf %69, %123 : vector<1x22xf32>
      %c2_i32 = arith.constant 2 : i32
      %125 = arith.addi %14, %c2_i32 : i32
      %c0_59 = arith.constant 0 : index
      %126 = arith.index_cast %125 : i32 to index
      %c0_60 = arith.constant 0 : index
      %127 = vector.load %arg2[%c0_59, %126, %c0_60] : memref<1x32x22xf32, #tpu.memory_space<vmem>>, vector<1x1x22xf32>
      %128 = vector.shape_cast %127 : vector<1x1x22xf32> to vector<1x22xf32>
      %c0_61 = arith.constant 0 : index
      %129 = arith.index_cast %125 : i32 to index
      %c0_62 = arith.constant 0 : index
      %130 = vector.load %arg3[%c0_61, %129, %c0_62] : memref<1x32x22xf32, #tpu.memory_space<vmem>>, vector<1x1x22xf32>
      %131 = vector.shape_cast %130 : vector<1x1x22xf32> to vector<1x22xf32>
      %132 = arith.mulf %121, %128 : vector<1x22xf32>
      %133 = arith.mulf %124, %131 : vector<1x22xf32>
      %134 = arith.subf %132, %133 : vector<1x22xf32>
      %135 = arith.mulf %121, %131 : vector<1x22xf32>
      %136 = arith.mulf %124, %128 : vector<1x22xf32>
      %137 = arith.addf %135, %136 : vector<1x22xf32>
      %cst_63 = arith.constant dense<0.000000e+00> : vector<1xf32>
      %138 = vector.multi_reduction <add>, %134, %cst_63 [1] : vector<1x22xf32> to vector<1xf32>
      %139 = vector.shape_cast %138 : vector<1xf32> to vector<1x1xf32>
      %cst_64 = arith.constant dense<0.000000e+00> : vector<1xf32>
      %140 = vector.multi_reduction <add>, %137, %cst_64 [1] : vector<1x22xf32> to vector<1xf32>
      %141 = vector.shape_cast %140 : vector<1xf32> to vector<1x1xf32>
      %c0_65 = arith.constant 0 : index
      %142 = arith.index_cast %125 : i32 to index
      %c0_66 = arith.constant 0 : index
      %143 = vector.load %arg6[%c0_65, %142, %c0_66] : memref<1x32x1xf32, #tpu.memory_space<vmem>>, vector<1x1x1xf32>
      %144 = vector.shape_cast %143 : vector<1x1x1xf32> to vector<1x1xf32>
      %145 = arith.subf %144, %139 : vector<1x1xf32>
      %c0_67 = arith.constant 0 : index
      %146 = arith.index_cast %125 : i32 to index
      %c0_68 = arith.constant 0 : index
      %147 = vector.load %arg7[%c0_67, %146, %c0_68] : memref<1x32x1xf32, #tpu.memory_space<vmem>>, vector<1x1x1xf32>
      %148 = vector.shape_cast %147 : vector<1x1x1xf32> to vector<1x1xf32>
      %149 = arith.subf %148, %141 : vector<1x1xf32>
      %c0_69 = arith.constant 0 : index
      %150 = arith.index_cast %125 : i32 to index
      %c0_70 = arith.constant 0 : index
      %151 = vector.load %arg4[%c0_69, %150, %c0_70] : memref<1x32x22xf32, #tpu.memory_space<vmem>>, vector<1x1x22xf32>
      %152 = vector.shape_cast %151 : vector<1x1x22xf32> to vector<1x22xf32>
      %c0_71 = arith.constant 0 : index
      %153 = arith.index_cast %125 : i32 to index
      %c0_72 = arith.constant 0 : index
      %154 = vector.load %arg5[%c0_71, %153, %c0_72] : memref<1x32x22xf32, #tpu.memory_space<vmem>>, vector<1x1x22xf32>
      %155 = vector.shape_cast %154 : vector<1x1x22xf32> to vector<1x22xf32>
      %156 = vector.broadcast %145 : vector<1x1xf32> to vector<1x22xf32>
      %157 = arith.mulf %156, %152 : vector<1x22xf32>
      %158 = vector.broadcast %149 : vector<1x1xf32> to vector<1x22xf32>
      %159 = arith.mulf %158, %155 : vector<1x22xf32>
      %160 = arith.subf %157, %159 : vector<1x22xf32>
      %161 = vector.broadcast %145 : vector<1x1xf32> to vector<1x22xf32>
      %162 = arith.mulf %161, %155 : vector<1x22xf32>
      %163 = vector.broadcast %149 : vector<1x1xf32> to vector<1x22xf32>
      %164 = arith.mulf %163, %152 : vector<1x22xf32>
      %165 = arith.addf %162, %164 : vector<1x22xf32>
      %c0_73 = arith.constant 0 : index
      %166 = arith.index_cast %125 : i32 to index
      %c0_74 = arith.constant 0 : index
      %167 = vector.load %arg8[%c0_73, %166, %c0_74] : memref<1x32x22xf32, #tpu.memory_space<vmem>>, vector<1x1x22xf32>
      %168 = vector.shape_cast %167 : vector<1x1x22xf32> to vector<1x22xf32>
      %169 = vector.shape_cast %160 : vector<1x22xf32> to vector<1x1x22xf32>
      tpu.vector_store %arg8[%c0_73, %166, %c0_74], %169 {strides = array<i32>} : memref<1x32x22xf32, #tpu.memory_space<vmem>>, vector<1x1x22xf32>,
      %c0_75 = arith.constant 0 : index
      %170 = arith.index_cast %125 : i32 to index
      %c0_76 = arith.constant 0 : index
      %171 = vector.load %arg9[%c0_75, %170, %c0_76] : memref<1x32x22xf32, #tpu.memory_space<vmem>>, vector<1x1x22xf32>
      %172 = vector.shape_cast %171 : vector<1x1x22xf32> to vector<1x22xf32>
      %173 = vector.shape_cast %165 : vector<1x22xf32> to vector<1x1x22xf32>
      tpu.vector_store %arg9[%c0_75, %170, %c0_76], %173 {strides = array<i32>} : memref<1x32x22xf32, #tpu.memory_space<vmem>>, vector<1x1x22xf32>,
      %cst_77 = arith.constant 0.00999999977 : f32
      %174 = vector.broadcast %cst_77 : f32 to vector<1x22xf32>
      %175 = arith.mulf %174, %105 : vector<1x22xf32>
      %176 = arith.addf %121, %175 : vector<1x22xf32>
      %cst_78 = arith.constant 0.00999999977 : f32
      %177 = vector.broadcast %cst_78 : f32 to vector<1x22xf32>
      %178 = arith.mulf %177, %110 : vector<1x22xf32>
      %179 = arith.addf %124, %178 : vector<1x22xf32>
      %c3_i32 = arith.constant 3 : i32
      %180 = arith.addi %14, %c3_i32 : i32
      %c0_79 = arith.constant 0 : index
      %181 = arith.index_cast %180 : i32 to index
      %c0_80 = arith.constant 0 : index
      %182 = vector.load %arg2[%c0_79, %181, %c0_80] : memref<1x32x22xf32, #tpu.memory_space<vmem>>, vector<1x1x22xf32>
      %183 = vector.shape_cast %182 : vector<1x1x22xf32> to vector<1x22xf32>
      %c0_81 = arith.constant 0 : index
      %184 = arith.index_cast %180 : i32 to index
      %c0_82 = arith.constant 0 : index
      %185 = vector.load %arg3[%c0_81, %184, %c0_82] : memref<1x32x22xf32, #tpu.memory_space<vmem>>, vector<1x1x22xf32>
      %186 = vector.shape_cast %185 : vector<1x1x22xf32> to vector<1x22xf32>
      %187 = arith.mulf %176, %183 : vector<1x22xf32>
      %188 = arith.mulf %179, %186 : vector<1x22xf32>
      %189 = arith.subf %187, %188 : vector<1x22xf32>
      %190 = arith.mulf %176, %186 : vector<1x22xf32>
      %191 = arith.mulf %179, %183 : vector<1x22xf32>
      %192 = arith.addf %190, %191 : vector<1x22xf32>
      %cst_83 = arith.constant dense<0.000000e+00> : vector<1xf32>
      %193 = vector.multi_reduction <add>, %189, %cst_83 [1] : vector<1x22xf32> to vector<1xf32>
      %194 = vector.shape_cast %193 : vector<1xf32> to vector<1x1xf32>
      %cst_84 = arith.constant dense<0.000000e+00> : vector<1xf32>
      %195 = vector.multi_reduction <add>, %192, %cst_84 [1] : vector<1x22xf32> to vector<1xf32>
      %196 = vector.shape_cast %195 : vector<1xf32> to vector<1x1xf32>
      %c0_85 = arith.constant 0 : index
      %197 = arith.index_cast %180 : i32 to index
      %c0_86 = arith.constant 0 : index
      %198 = vector.load %arg6[%c0_85, %197, %c0_86] : memref<1x32x1xf32, #tpu.memory_space<vmem>>, vector<1x1x1xf32>
      %199 = vector.shape_cast %198 : vector<1x1x1xf32> to vector<1x1xf32>
      %200 = arith.subf %199, %194 : vector<1x1xf32>
      %c0_87 = arith.constant 0 : index
      %201 = arith.index_cast %180 : i32 to index
      %c0_88 = arith.constant 0 : index
      %202 = vector.load %arg7[%c0_87, %201, %c0_88] : memref<1x32x1xf32, #tpu.memory_space<vmem>>, vector<1x1x1xf32>
      %203 = vector.shape_cast %202 : vector<1x1x1xf32> to vector<1x1xf32>
      %204 = arith.subf %203, %196 : vector<1x1xf32>
      %c0_89 = arith.constant 0 : index
      %205 = arith.index_cast %180 : i32 to index
      %c0_90 = arith.constant 0 : index
      %206 = vector.load %arg4[%c0_89, %205, %c0_90] : memref<1x32x22xf32, #tpu.memory_space<vmem>>, vector<1x1x22xf32>
      %207 = vector.shape_cast %206 : vector<1x1x22xf32> to vector<1x22xf32>
      %c0_91 = arith.constant 0 : index
      %208 = arith.index_cast %180 : i32 to index
      %c0_92 = arith.constant 0 : index
      %209 = vector.load %arg5[%c0_91, %208, %c0_92] : memref<1x32x22xf32, #tpu.memory_space<vmem>>, vector<1x1x22xf32>
      %210 = vector.shape_cast %209 : vector<1x1x22xf32> to vector<1x22xf32>
      %211 = vector.broadcast %200 : vector<1x1xf32> to vector<1x22xf32>
      %212 = arith.mulf %211, %207 : vector<1x22xf32>
      %213 = vector.broadcast %204 : vector<1x1xf32> to vector<1x22xf32>
      %214 = arith.mulf %213, %210 : vector<1x22xf32>
      %215 = arith.subf %212, %214 : vector<1x22xf32>
      %216 = vector.broadcast %200 : vector<1x1xf32> to vector<1x22xf32>
      %217 = arith.mulf %216, %210 : vector<1x22xf32>
      %218 = vector.broadcast %204 : vector<1x1xf32> to vector<1x22xf32>
      %219 = arith.mulf %218, %207 : vector<1x22xf32>
      %220 = arith.addf %217, %219 : vector<1x22xf32>
      %c0_93 = arith.constant 0 : index
      %221 = arith.index_cast %180 : i32 to index
      %c0_94 = arith.constant 0 : index
      %222 = vector.load %arg8[%c0_93, %221, %c0_94] : memref<1x32x22xf32, #tpu.memory_space<vmem>>, vector<1x1x22xf32>
      %223 = vector.shape_cast %222 : vector<1x1x22xf32> to vector<1x22xf32>
      %224 = vector.shape_cast %215 : vector<1x22xf32> to vector<1x1x22xf32>
      tpu.vector_store %arg8[%c0_93, %221, %c0_94], %224 {strides = array<i32>} : memref<1x32x22xf32, #tpu.memory_space<vmem>>, vector<1x1x22xf32>,
      %c0_95 = arith.constant 0 : index
      %225 = arith.index_cast %180 : i32 to index
      %c0_96 = arith.constant 0 : index
      %226 = vector.load %arg9[%c0_95, %225, %c0_96] : memref<1x32x22xf32, #tpu.memory_space<vmem>>, vector<1x1x22xf32>
      %227 = vector.shape_cast %226 : vector<1x1x22xf32> to vector<1x22xf32>
      %228 = vector.shape_cast %220 : vector<1x22xf32> to vector<1x1x22xf32>
      tpu.vector_store %arg9[%c0_95, %225, %c0_96], %228 {strides = array<i32>} : memref<1x32x22xf32, #tpu.memory_space<vmem>>, vector<1x1x22xf32>,
      %cst_97 = arith.constant 0.00999999977 : f32
      %229 = vector.broadcast %cst_97 : f32 to vector<1x22xf32>
      %230 = arith.mulf %229, %160 : vector<1x22xf32>
      %231 = arith.addf %176, %230 : vector<1x22xf32>
      %cst_98 = arith.constant 0.00999999977 : f32
      %232 = vector.broadcast %cst_98 : f32 to vector<1x22xf32>
      %233 = arith.mulf %232, %165 : vector<1x22xf32>
      %234 = arith.addf %179, %233 : vector<1x22xf32>
      %c4_i32_99 = arith.constant 4 : i32
      %235 = arith.addi %14, %c4_i32_99 : i32
      %c0_100 = arith.constant 0 : index
      %236 = arith.index_cast %235 : i32 to index
      %c0_101 = arith.constant 0 : index
      %237 = vector.load %arg2[%c0_100, %236, %c0_101] : memref<1x32x22xf32, #tpu.memory_space<vmem>>, vector<1x1x22xf32>
      %238 = vector.shape_cast %237 : vector<1x1x22xf32> to vector<1x22xf32>
      %c0_102 = arith.constant 0 : index
      %239 = arith.index_cast %235 : i32 to index
      %c0_103 = arith.constant 0 : index
      %240 = vector.load %arg3[%c0_102, %239, %c0_103] : memref<1x32x22xf32, #tpu.memory_space<vmem>>, vector<1x1x22xf32>
      %241 = vector.shape_cast %240 : vector<1x1x22xf32> to vector<1x22xf32>
      %242 = arith.mulf %231, %238 : vector<1x22xf32>
      %243 = arith.mulf %234, %241 : vector<1x22xf32>
      %244 = arith.subf %242, %243 : vector<1x22xf32>
      %245 = arith.mulf %231, %241 : vector<1x22xf32>
      %246 = arith.mulf %234, %238 : vector<1x22xf32>
      %247 = arith.addf %245, %246 : vector<1x22xf32>
      %cst_104 = arith.constant dense<0.000000e+00> : vector<1xf32>
      %248 = vector.multi_reduction <add>, %244, %cst_104 [1] : vector<1x22xf32> to vector<1xf32>
      %249 = vector.shape_cast %248 : vector<1xf32> to vector<1x1xf32>
      %cst_105 = arith.constant dense<0.000000e+00> : vector<1xf32>
      %250 = vector.multi_reduction <add>, %247, %cst_105 [1] : vector<1x22xf32> to vector<1xf32>
      %251 = vector.shape_cast %250 : vector<1xf32> to vector<1x1xf32>
      %c0_106 = arith.constant 0 : index
      %252 = arith.index_cast %235 : i32 to index
      %c0_107 = arith.constant 0 : index
      %253 = vector.load %arg6[%c0_106, %252, %c0_107] : memref<1x32x1xf32, #tpu.memory_space<vmem>>, vector<1x1x1xf32>
      %254 = vector.shape_cast %253 : vector<1x1x1xf32> to vector<1x1xf32>
      %255 = arith.subf %254, %249 : vector<1x1xf32>
      %c0_108 = arith.constant 0 : index
      %256 = arith.index_cast %235 : i32 to index
      %c0_109 = arith.constant 0 : index
      %257 = vector.load %arg7[%c0_108, %256, %c0_109] : memref<1x32x1xf32, #tpu.memory_space<vmem>>, vector<1x1x1xf32>
      %258 = vector.shape_cast %257 : vector<1x1x1xf32> to vector<1x1xf32>
      %259 = arith.subf %258, %251 : vector<1x1xf32>
      %c0_110 = arith.constant 0 : index
      %260 = arith.index_cast %235 : i32 to index
      %c0_111 = arith.constant 0 : index
      %261 = vector.load %arg4[%c0_110, %260, %c0_111] : memref<1x32x22xf32, #tpu.memory_space<vmem>>, vector<1x1x22xf32>
      %262 = vector.shape_cast %261 : vector<1x1x22xf32> to vector<1x22xf32>
      %c0_112 = arith.constant 0 : index
      %263 = arith.index_cast %235 : i32 to index
      %c0_113 = arith.constant 0 : index
      %264 = vector.load %arg5[%c0_112, %263, %c0_113] : memref<1x32x22xf32, #tpu.memory_space<vmem>>, vector<1x1x22xf32>
      %265 = vector.shape_cast %264 : vector<1x1x22xf32> to vector<1x22xf32>
      %266 = vector.broadcast %255 : vector<1x1xf32> to vector<1x22xf32>
      %267 = arith.mulf %266, %262 : vector<1x22xf32>
      %268 = vector.broadcast %259 : vector<1x1xf32> to vector<1x22xf32>
      %269 = arith.mulf %268, %265 : vector<1x22xf32>
      %270 = arith.subf %267, %269 : vector<1x22xf32>
      %271 = vector.broadcast %255 : vector<1x1xf32> to vector<1x22xf32>
      %272 = arith.mulf %271, %265 : vector<1x22xf32>
      %273 = vector.broadcast %259 : vector<1x1xf32> to vector<1x22xf32>
      %274 = arith.mulf %273, %262 : vector<1x22xf32>
      %275 = arith.addf %272, %274 : vector<1x22xf32>
      %c0_114 = arith.constant 0 : index
      %276 = arith.index_cast %235 : i32 to index
      %c0_115 = arith.constant 0 : index
      %277 = vector.load %arg8[%c0_114, %276, %c0_115] : memref<1x32x22xf32, #tpu.memory_space<vmem>>, vector<1x1x22xf32>
      %278 = vector.shape_cast %277 : vector<1x1x22xf32> to vector<1x22xf32>
      %279 = vector.shape_cast %270 : vector<1x22xf32> to vector<1x1x22xf32>
      tpu.vector_store %arg8[%c0_114, %276, %c0_115], %279 {strides = array<i32>} : memref<1x32x22xf32, #tpu.memory_space<vmem>>, vector<1x1x22xf32>,
      %c0_116 = arith.constant 0 : index
      %280 = arith.index_cast %235 : i32 to index
      %c0_117 = arith.constant 0 : index
      %281 = vector.load %arg9[%c0_116, %280, %c0_117] : memref<1x32x22xf32, #tpu.memory_space<vmem>>, vector<1x1x22xf32>
      %282 = vector.shape_cast %281 : vector<1x1x22xf32> to vector<1x22xf32>
      %283 = vector.shape_cast %275 : vector<1x22xf32> to vector<1x1x22xf32>
      tpu.vector_store %arg9[%c0_116, %280, %c0_117], %283 {strides = array<i32>} : memref<1x32x22xf32, #tpu.memory_space<vmem>>, vector<1x1x22xf32>,
      %cst_118 = arith.constant 0.00999999977 : f32
      %284 = vector.broadcast %cst_118 : f32 to vector<1x22xf32>
      %285 = arith.mulf %284, %215 : vector<1x22xf32>
      %286 = arith.addf %231, %285 : vector<1x22xf32>
      %cst_119 = arith.constant 0.00999999977 : f32
      %287 = vector.broadcast %cst_119 : f32 to vector<1x22xf32>
      %288 = arith.mulf %287, %220 : vector<1x22xf32>
      %289 = arith.addf %234, %288 : vector<1x22xf32>
      %c5_i32 = arith.constant 5 : i32
      %290 = arith.addi %14, %c5_i32 : i32
      %c0_120 = arith.constant 0 : index
      %291 = arith.index_cast %290 : i32 to index
      %c0_121 = arith.constant 0 : index
      %292 = vector.load %arg2[%c0_120, %291, %c0_121] : memref<1x32x22xf32, #tpu.memory_space<vmem>>, vector<1x1x22xf32>
      %293 = vector.shape_cast %292 : vector<1x1x22xf32> to vector<1x22xf32>
      %c0_122 = arith.constant 0 : index
      %294 = arith.index_cast %290 : i32 to index
      %c0_123 = arith.constant 0 : index
      %295 = vector.load %arg3[%c0_122, %294, %c0_123] : memref<1x32x22xf32, #tpu.memory_space<vmem>>, vector<1x1x22xf32>
      %296 = vector.shape_cast %295 : vector<1x1x22xf32> to vector<1x22xf32>
      %297 = arith.mulf %286, %293 : vector<1x22xf32>
      %298 = arith.mulf %289, %296 : vector<1x22xf32>
      %299 = arith.subf %297, %298 : vector<1x22xf32>
      %300 = arith.mulf %286, %296 : vector<1x22xf32>
      %301 = arith.mulf %289, %293 : vector<1x22xf32>
      %302 = arith.addf %300, %301 : vector<1x22xf32>
      %cst_124 = arith.constant dense<0.000000e+00> : vector<1xf32>
      %303 = vector.multi_reduction <add>, %299, %cst_124 [1] : vector<1x22xf32> to vector<1xf32>
      %304 = vector.shape_cast %303 : vector<1xf32> to vector<1x1xf32>
      %cst_125 = arith.constant dense<0.000000e+00> : vector<1xf32>
      %305 = vector.multi_reduction <add>, %302, %cst_125 [1] : vector<1x22xf32> to vector<1xf32>
      %306 = vector.shape_cast %305 : vector<1xf32> to vector<1x1xf32>
      %c0_126 = arith.constant 0 : index
      %307 = arith.index_cast %290 : i32 to index
      %c0_127 = arith.constant 0 : index
      %308 = vector.load %arg6[%c0_126, %307, %c0_127] : memref<1x32x1xf32, #tpu.memory_space<vmem>>, vector<1x1x1xf32>
      %309 = vector.shape_cast %308 : vector<1x1x1xf32> to vector<1x1xf32>
      %310 = arith.subf %309, %304 : vector<1x1xf32>
      %c0_128 = arith.constant 0 : index
      %311 = arith.index_cast %290 : i32 to index
      %c0_129 = arith.constant 0 : index
      %312 = vector.load %arg7[%c0_128, %311, %c0_129] : memref<1x32x1xf32, #tpu.memory_space<vmem>>, vector<1x1x1xf32>
      %313 = vector.shape_cast %312 : vector<1x1x1xf32> to vector<1x1xf32>
      %314 = arith.subf %313, %306 : vector<1x1xf32>
      %c0_130 = arith.constant 0 : index
      %315 = arith.index_cast %290 : i32 to index
      %c0_131 = arith.constant 0 : index
      %316 = vector.load %arg4[%c0_130, %315, %c0_131] : memref<1x32x22xf32, #tpu.memory_space<vmem>>, vector<1x1x22xf32>
      %317 = vector.shape_cast %316 : vector<1x1x22xf32> to vector<1x22xf32>
      %c0_132 = arith.constant 0 : index
      %318 = arith.index_cast %290 : i32 to index
      %c0_133 = arith.constant 0 : index
      %319 = vector.load %arg5[%c0_132, %318, %c0_133] : memref<1x32x22xf32, #tpu.memory_space<vmem>>, vector<1x1x22xf32>
      %320 = vector.shape_cast %319 : vector<1x1x22xf32> to vector<1x22xf32>
      %321 = vector.broadcast %310 : vector<1x1xf32> to vector<1x22xf32>
      %322 = arith.mulf %321, %317 : vector<1x22xf32>
      %323 = vector.broadcast %314 : vector<1x1xf32> to vector<1x22xf32>
      %324 = arith.mulf %323, %320 : vector<1x22xf32>
      %325 = arith.subf %322, %324 : vector<1x22xf32>
      %326 = vector.broadcast %310 : vector<1x1xf32> to vector<1x22xf32>
      %327 = arith.mulf %326, %320 : vector<1x22xf32>
      %328 = vector.broadcast %314 : vector<1x1xf32> to vector<1x22xf32>
      %329 = arith.mulf %328, %317 : vector<1x22xf32>
      %330 = arith.addf %327, %329 : vector<1x22xf32>
      %c0_134 = arith.constant 0 : index
      %331 = arith.index_cast %290 : i32 to index
      %c0_135 = arith.constant 0 : index
      %332 = vector.load %arg8[%c0_134, %331, %c0_135] : memref<1x32x22xf32, #tpu.memory_space<vmem>>, vector<1x1x22xf32>
      %333 = vector.shape_cast %332 : vector<1x1x22xf32> to vector<1x22xf32>
      %334 = vector.shape_cast %325 : vector<1x22xf32> to vector<1x1x22xf32>
      tpu.vector_store %arg8[%c0_134, %331, %c0_135], %334 {strides = array<i32>} : memref<1x32x22xf32, #tpu.memory_space<vmem>>, vector<1x1x22xf32>,
      %c0_136 = arith.constant 0 : index
      %335 = arith.index_cast %290 : i32 to index
      %c0_137 = arith.constant 0 : index
      %336 = vector.load %arg9[%c0_136, %335, %c0_137] : memref<1x32x22xf32, #tpu.memory_space<vmem>>, vector<1x1x22xf32>
      %337 = vector.shape_cast %336 : vector<1x1x22xf32> to vector<1x22xf32>
      %338 = vector.shape_cast %330 : vector<1x22xf32> to vector<1x1x22xf32>
      tpu.vector_store %arg9[%c0_136, %335, %c0_137], %338 {strides = array<i32>} : memref<1x32x22xf32, #tpu.memory_space<vmem>>, vector<1x1x22xf32>,
      %cst_138 = arith.constant 0.00999999977 : f32
      %339 = vector.broadcast %cst_138 : f32 to vector<1x22xf32>
      %340 = arith.mulf %339, %270 : vector<1x22xf32>
      %341 = arith.addf %286, %340 : vector<1x22xf32>
      %cst_139 = arith.constant 0.00999999977 : f32
      %342 = vector.broadcast %cst_139 : f32 to vector<1x22xf32>
      %343 = arith.mulf %342, %275 : vector<1x22xf32>
      %344 = arith.addf %289, %343 : vector<1x22xf32>
      %c6_i32 = arith.constant 6 : i32
      %345 = arith.addi %14, %c6_i32 : i32
      %c0_140 = arith.constant 0 : index
      %346 = arith.index_cast %345 : i32 to index
      %c0_141 = arith.constant 0 : index
      %347 = vector.load %arg2[%c0_140, %346, %c0_141] : memref<1x32x22xf32, #tpu.memory_space<vmem>>, vector<1x1x22xf32>
      %348 = vector.shape_cast %347 : vector<1x1x22xf32> to vector<1x22xf32>
      %c0_142 = arith.constant 0 : index
      %349 = arith.index_cast %345 : i32 to index
      %c0_143 = arith.constant 0 : index
      %350 = vector.load %arg3[%c0_142, %349, %c0_143] : memref<1x32x22xf32, #tpu.memory_space<vmem>>, vector<1x1x22xf32>
      %351 = vector.shape_cast %350 : vector<1x1x22xf32> to vector<1x22xf32>
      %352 = arith.mulf %341, %348 : vector<1x22xf32>
      %353 = arith.mulf %344, %351 : vector<1x22xf32>
      %354 = arith.subf %352, %353 : vector<1x22xf32>
      %355 = arith.mulf %341, %351 : vector<1x22xf32>
      %356 = arith.mulf %344, %348 : vector<1x22xf32>
      %357 = arith.addf %355, %356 : vector<1x22xf32>
      %cst_144 = arith.constant dense<0.000000e+00> : vector<1xf32>
      %358 = vector.multi_reduction <add>, %354, %cst_144 [1] : vector<1x22xf32> to vector<1xf32>
      %359 = vector.shape_cast %358 : vector<1xf32> to vector<1x1xf32>
      %cst_145 = arith.constant dense<0.000000e+00> : vector<1xf32>
      %360 = vector.multi_reduction <add>, %357, %cst_145 [1] : vector<1x22xf32> to vector<1xf32>
      %361 = vector.shape_cast %360 : vector<1xf32> to vector<1x1xf32>
      %c0_146 = arith.constant 0 : index
      %362 = arith.index_cast %345 : i32 to index
      %c0_147 = arith.constant 0 : index
      %363 = vector.load %arg6[%c0_146, %362, %c0_147] : memref<1x32x1xf32, #tpu.memory_space<vmem>>, vector<1x1x1xf32>
      %364 = vector.shape_cast %363 : vector<1x1x1xf32> to vector<1x1xf32>
      %365 = arith.subf %364, %359 : vector<1x1xf32>
      %c0_148 = arith.constant 0 : index
      %366 = arith.index_cast %345 : i32 to index
      %c0_149 = arith.constant 0 : index
      %367 = vector.load %arg7[%c0_148, %366, %c0_149] : memref<1x32x1xf32, #tpu.memory_space<vmem>>, vector<1x1x1xf32>
      %368 = vector.shape_cast %367 : vector<1x1x1xf32> to vector<1x1xf32>
      %369 = arith.subf %368, %361 : vector<1x1xf32>
      %c0_150 = arith.constant 0 : index
      %370 = arith.index_cast %345 : i32 to index
      %c0_151 = arith.constant 0 : index
      %371 = vector.load %arg4[%c0_150, %370, %c0_151] : memref<1x32x22xf32, #tpu.memory_space<vmem>>, vector<1x1x22xf32>
      %372 = vector.shape_cast %371 : vector<1x1x22xf32> to vector<1x22xf32>
      %c0_152 = arith.constant 0 : index
      %373 = arith.index_cast %345 : i32 to index
      %c0_153 = arith.constant 0 : index
      %374 = vector.load %arg5[%c0_152, %373, %c0_153] : memref<1x32x22xf32, #tpu.memory_space<vmem>>, vector<1x1x22xf32>
      %375 = vector.shape_cast %374 : vector<1x1x22xf32> to vector<1x22xf32>
      %376 = vector.broadcast %365 : vector<1x1xf32> to vector<1x22xf32>
      %377 = arith.mulf %376, %372 : vector<1x22xf32>
      %378 = vector.broadcast %369 : vector<1x1xf32> to vector<1x22xf32>
      %379 = arith.mulf %378, %375 : vector<1x22xf32>
      %380 = arith.subf %377, %379 : vector<1x22xf32>
      %381 = vector.broadcast %365 : vector<1x1xf32> to vector<1x22xf32>
      %382 = arith.mulf %381, %375 : vector<1x22xf32>
      %383 = vector.broadcast %369 : vector<1x1xf32> to vector<1x22xf32>
      %384 = arith.mulf %383, %372 : vector<1x22xf32>
      %385 = arith.addf %382, %384 : vector<1x22xf32>
      %c0_154 = arith.constant 0 : index
      %386 = arith.index_cast %345 : i32 to index
      %c0_155 = arith.constant 0 : index
      %387 = vector.load %arg8[%c0_154, %386, %c0_155] : memref<1x32x22xf32, #tpu.memory_space<vmem>>, vector<1x1x22xf32>
      %388 = vector.shape_cast %387 : vector<1x1x22xf32> to vector<1x22xf32>
      %389 = vector.shape_cast %380 : vector<1x22xf32> to vector<1x1x22xf32>
      tpu.vector_store %arg8[%c0_154, %386, %c0_155], %389 {strides = array<i32>} : memref<1x32x22xf32, #tpu.memory_space<vmem>>, vector<1x1x22xf32>,
      %c0_156 = arith.constant 0 : index
      %390 = arith.index_cast %345 : i32 to index
      %c0_157 = arith.constant 0 : index
      %391 = vector.load %arg9[%c0_156, %390, %c0_157] : memref<1x32x22xf32, #tpu.memory_space<vmem>>, vector<1x1x22xf32>
      %392 = vector.shape_cast %391 : vector<1x1x22xf32> to vector<1x22xf32>
      %393 = vector.shape_cast %385 : vector<1x22xf32> to vector<1x1x22xf32>
      tpu.vector_store %arg9[%c0_156, %390, %c0_157], %393 {strides = array<i32>} : memref<1x32x22xf32, #tpu.memory_space<vmem>>, vector<1x1x22xf32>,
      %cst_158 = arith.constant 0.00999999977 : f32
      %394 = vector.broadcast %cst_158 : f32 to vector<1x22xf32>
      %395 = arith.mulf %394, %325 : vector<1x22xf32>
      %396 = arith.addf %341, %395 : vector<1x22xf32>
      %cst_159 = arith.constant 0.00999999977 : f32
      %397 = vector.broadcast %cst_159 : f32 to vector<1x22xf32>
      %398 = arith.mulf %397, %330 : vector<1x22xf32>
      %399 = arith.addf %344, %398 : vector<1x22xf32>
      %c7_i32 = arith.constant 7 : i32
      %400 = arith.addi %14, %c7_i32 : i32
      %c0_160 = arith.constant 0 : index
      %401 = arith.index_cast %400 : i32 to index
      %c0_161 = arith.constant 0 : index
      %402 = vector.load %arg2[%c0_160, %401, %c0_161] : memref<1x32x22xf32, #tpu.memory_space<vmem>>, vector<1x1x22xf32>
      %403 = vector.shape_cast %402 : vector<1x1x22xf32> to vector<1x22xf32>
      %c0_162 = arith.constant 0 : index
      %404 = arith.index_cast %400 : i32 to index
      %c0_163 = arith.constant 0 : index
      %405 = vector.load %arg3[%c0_162, %404, %c0_163] : memref<1x32x22xf32, #tpu.memory_space<vmem>>, vector<1x1x22xf32>
      %406 = vector.shape_cast %405 : vector<1x1x22xf32> to vector<1x22xf32>
      %407 = arith.mulf %396, %403 : vector<1x22xf32>
      %408 = arith.mulf %399, %406 : vector<1x22xf32>
      %409 = arith.subf %407, %408 : vector<1x22xf32>
      %410 = arith.mulf %396, %406 : vector<1x22xf32>
      %411 = arith.mulf %399, %403 : vector<1x22xf32>
      %412 = arith.addf %410, %411 : vector<1x22xf32>
      %cst_164 = arith.constant dense<0.000000e+00> : vector<1xf32>
      %413 = vector.multi_reduction <add>, %409, %cst_164 [1] : vector<1x22xf32> to vector<1xf32>
      %414 = vector.shape_cast %413 : vector<1xf32> to vector<1x1xf32>
      %cst_165 = arith.constant dense<0.000000e+00> : vector<1xf32>
      %415 = vector.multi_reduction <add>, %412, %cst_165 [1] : vector<1x22xf32> to vector<1xf32>
      %416 = vector.shape_cast %415 : vector<1xf32> to vector<1x1xf32>
      %c0_166 = arith.constant 0 : index
      %417 = arith.index_cast %400 : i32 to index
      %c0_167 = arith.constant 0 : index
      %418 = vector.load %arg6[%c0_166, %417, %c0_167] : memref<1x32x1xf32, #tpu.memory_space<vmem>>, vector<1x1x1xf32>
      %419 = vector.shape_cast %418 : vector<1x1x1xf32> to vector<1x1xf32>
      %420 = arith.subf %419, %414 : vector<1x1xf32>
      %c0_168 = arith.constant 0 : index
      %421 = arith.index_cast %400 : i32 to index
      %c0_169 = arith.constant 0 : index
      %422 = vector.load %arg7[%c0_168, %421, %c0_169] : memref<1x32x1xf32, #tpu.memory_space<vmem>>, vector<1x1x1xf32>
      %423 = vector.shape_cast %422 : vector<1x1x1xf32> to vector<1x1xf32>
      %424 = arith.subf %423, %416 : vector<1x1xf32>
      %c0_170 = arith.constant 0 : index
      %425 = arith.index_cast %400 : i32 to index
      %c0_171 = arith.constant 0 : index
      %426 = vector.load %arg4[%c0_170, %425, %c0_171] : memref<1x32x22xf32, #tpu.memory_space<vmem>>, vector<1x1x22xf32>
      %427 = vector.shape_cast %426 : vector<1x1x22xf32> to vector<1x22xf32>
      %c0_172 = arith.constant 0 : index
      %428 = arith.index_cast %400 : i32 to index
      %c0_173 = arith.constant 0 : index
      %429 = vector.load %arg5[%c0_172, %428, %c0_173] : memref<1x32x22xf32, #tpu.memory_space<vmem>>, vector<1x1x22xf32>
      %430 = vector.shape_cast %429 : vector<1x1x22xf32> to vector<1x22xf32>
      %431 = vector.broadcast %420 : vector<1x1xf32> to vector<1x22xf32>
      %432 = arith.mulf %431, %427 : vector<1x22xf32>
      %433 = vector.broadcast %424 : vector<1x1xf32> to vector<1x22xf32>
      %434 = arith.mulf %433, %430 : vector<1x22xf32>
      %435 = arith.subf %432, %434 : vector<1x22xf32>
      %436 = vector.broadcast %420 : vector<1x1xf32> to vector<1x22xf32>
      %437 = arith.mulf %436, %430 : vector<1x22xf32>
      %438 = vector.broadcast %424 : vector<1x1xf32> to vector<1x22xf32>
      %439 = arith.mulf %438, %427 : vector<1x22xf32>
      %440 = arith.addf %437, %439 : vector<1x22xf32>
      %c0_174 = arith.constant 0 : index
      %441 = arith.index_cast %400 : i32 to index
      %c0_175 = arith.constant 0 : index
      %442 = vector.load %arg8[%c0_174, %441, %c0_175] : memref<1x32x22xf32, #tpu.memory_space<vmem>>, vector<1x1x22xf32>
      %443 = vector.shape_cast %442 : vector<1x1x22xf32> to vector<1x22xf32>
      %444 = vector.shape_cast %435 : vector<1x22xf32> to vector<1x1x22xf32>
      tpu.vector_store %arg8[%c0_174, %441, %c0_175], %444 {strides = array<i32>} : memref<1x32x22xf32, #tpu.memory_space<vmem>>, vector<1x1x22xf32>,
      %c0_176 = arith.constant 0 : index
      %445 = arith.index_cast %400 : i32 to index
      %c0_177 = arith.constant 0 : index
      %446 = vector.load %arg9[%c0_176, %445, %c0_177] : memref<1x32x22xf32, #tpu.memory_space<vmem>>, vector<1x1x22xf32>
      %447 = vector.shape_cast %446 : vector<1x1x22xf32> to vector<1x22xf32>
      %448 = vector.shape_cast %440 : vector<1x22xf32> to vector<1x1x22xf32>
      tpu.vector_store %arg9[%c0_176, %445, %c0_177], %448 {strides = array<i32>} : memref<1x32x22xf32, #tpu.memory_space<vmem>>, vector<1x1x22xf32>,
      %cst_178 = arith.constant 0.00999999977 : f32
      %449 = vector.broadcast %cst_178 : f32 to vector<1x22xf32>
      %450 = arith.mulf %449, %380 : vector<1x22xf32>
      %451 = arith.addf %396, %450 : vector<1x22xf32>
      %cst_179 = arith.constant 0.00999999977 : f32
      %452 = vector.broadcast %cst_179 : f32 to vector<1x22xf32>
      %453 = arith.mulf %452, %385 : vector<1x22xf32>
      %454 = arith.addf %399, %453 : vector<1x22xf32>
      scf.yield %451, %454, %435, %440 : vector<1x22xf32>, vector<1x22xf32>, vector<1x22xf32>, vector<1x22xf32>
    }
    %c4_i32_9 = arith.constant 4 : i32
    %c0_10 = arith.constant 0 : index
    %c0_11 = arith.constant 0 : index
    %9 = vector.load %arg10[%c0_10, %c0_11] : memref<1x22xf32, #tpu.memory_space<vmem>>, vector<1x22xf32>
    tpu.vector_store %arg10[%c0_10, %c0_11], %8#0 {strides = array<i32>} : memref<1x22xf32, #tpu.memory_space<vmem>>, vector<1x22xf32>,
    %c0_12 = arith.constant 0 : index
    %c0_13 = arith.constant 0 : index
    %10 = vector.load %arg11[%c0_12, %c0_13] : memref<1x22xf32, #tpu.memory_space<vmem>>, vector<1x22xf32>
    tpu.vector_store %arg11[%c0_12, %c0_13], %8#1 {strides = array<i32>} : memref<1x22xf32, #tpu.memory_space<vmem>>, vector<1x22xf32>,
    %c0_14 = arith.constant 0 : index
    %c0_15 = arith.constant 0 : index
    %11 = vector.load %arg12[%c0_14, %c0_15] : memref<1x22xf32, #tpu.memory_space<vmem>>, vector<1x22xf32>
    tpu.vector_store %arg12[%c0_14, %c0_15], %8#2 {strides = array<i32>} : memref<1x22xf32, #tpu.memory_space<vmem>>, vector<1x22xf32>,
    %c0_16 = arith.constant 0 : index
    %c0_17 = arith.constant 0 : index
    %12 = vector.load %arg13[%c0_16, %c0_17] : memref<1x22xf32, #tpu.memory_space<vmem>>, vector<1x22xf32>
    tpu.vector_store %arg13[%c0_16, %c0_17], %8#3 {strides = array<i32>} : memref<1x22xf32, #tpu.memory_space<vmem>>, vector<1x22xf32>,
    return
  }
  func.func @transform_0(%arg0: i32, %arg1: i32) -> (i32, i32, i32) {
    %c0_i32 = arith.constant 0 : i32
    %c0_i32_0 = arith.constant 0 : i32
    return %arg0, %arg1, %c0_i32 : i32, i32, i32
  }
  func.func @transform_1(%arg0: i32, %arg1: i32) -> (i32, i32, i32) {
    %c0_i32 = arith.constant 0 : i32
    %c0_i32_0 = arith.constant 0 : i32
    return %arg0, %arg1, %c0_i32 : i32, i32, i32
  }
  func.func @transform_2(%arg0: i32, %arg1: i32) -> (i32, i32, i32) {
    %c0_i32 = arith.constant 0 : i32
    %c0_i32_0 = arith.constant 0 : i32
    return %arg0, %arg1, %c0_i32 : i32, i32, i32
  }
  func.func @transform_3(%arg0: i32, %arg1: i32) -> (i32, i32, i32) {
    %c0_i32 = arith.constant 0 : i32
    %c0_i32_0 = arith.constant 0 : i32
    return %arg0, %arg1, %c0_i32 : i32, i32, i32
  }
  func.func @transform_4(%arg0: i32, %arg1: i32) -> (i32, i32, i32) {
    %c0_i32 = arith.constant 0 : i32
    %c0_i32_0 = arith.constant 0 : i32
    return %arg0, %arg1, %c0_i32 : i32, i32, i32
  }
  func.func @transform_5(%arg0: i32, %arg1: i32) -> (i32, i32, i32) {
    %c0_i32 = arith.constant 0 : i32
    %c0_i32_0 = arith.constant 0 : i32
    return %arg0, %arg1, %c0_i32 : i32, i32, i32
  }
  func.func @transform_6(%arg0: i32, %arg1: i32) -> (i32, i32, i32) {
    %c0_i32 = arith.constant 0 : i32
    %c0_i32_0 = arith.constant 0 : i32
    return %arg0, %arg1, %c0_i32 : i32, i32, i32
  }
  func.func @transform_7(%arg0: i32, %arg1: i32) -> (i32, i32, i32) {
    %c0_i32 = arith.constant 0 : i32
    %c0_i32_0 = arith.constant 0 : i32
    return %arg0, %arg1, %c0_i32 : i32, i32, i32
  }
}

</mosaic_0001>

<llo_original>
// kernel: tpu_custom_call.1
$region0: #{tpu_custom_call.1}
  #allocation0 [shape = 'u32[]', space=smem, size = 0x4, offset = 0x4, fixed_abs, tag = 'smem constant byte address 0x4 - core index']
  #allocation1 [shape = 'u32[144,128]{1,0:T(1,128)}', space=vmem, size = 0x12000, scoped, tag = 'internal scratch']
  #allocation2 [shape = 'f32[1,22]{1,0:T(1,128)}', space=vmem, size = 0x200, scoped, tag = 'scratch operand']
  #allocation3 [shape = 'f32[1,22]{1,0:T(1,128)}', space=vmem, size = 0x200, scoped, tag = 'scratch operand']
  #allocation4 [shape = 'f32[1,22]{1,0:T(1,128)}', space=vmem, size = 0x200, scoped, tag = 'scratch operand']
  #allocation5 [shape = 'f32[1,22]{1,0:T(1,128)}', space=vmem, size = 0x200, scoped, tag = 'scratch operand']
  %s0 = inlined_call_operand.vmem [shape: f32[2,32,22], index: 0, kind: input, shape index: {}]
  %s1 = inlined_call_operand.vmem [shape: f32[2,32,22], index: 1, kind: input, shape index: {}]
  %s2 = inlined_call_operand.vmem [shape: f32[2,32,22], index: 2, kind: input, shape index: {}]
  %s3 = inlined_call_operand.vmem [shape: f32[2,32,22], index: 3, kind: input, shape index: {}]
  %s4 = inlined_call_operand.vmem [shape: f32[2,32,1], index: 4, kind: input, shape index: {}]
  %s5 = inlined_call_operand.vmem [shape: f32[2,32,1], index: 5, kind: input, shape index: {}]
  %s6 = inlined_call_operand.vmem [shape: f32[2,32,22], index: 6, kind: output, shape index: {0}]
  %s7 = inlined_call_operand.vmem [shape: f32[2,32,22], index: 7, kind: output, shape index: {1}]
  %8 = xla_tuple %s6, %s7
  %s9 = sld [smem:[#allocation0]]
  $region76: #{tpu_custom_call.1} parent=0
    _
  %s11 = ssub.s32 1, %s9
  %s12 = scalar_select 0, %s11, %s9
  loop: start=0, step=1, limit=4
  $region2: #{tpu_custom_call.1} parent=0 // loop_pre_header
    _
  $region3: #{tpu_custom_call.1} parent=0 // loop_header
    %s14 = sphi 0, %s18
    %p15 = scmp.ge.s32.totalorder %s14, 4
    %s21 = sphi 0, %s33
    %s22 = sphi 0, %s29
    %s23 = sphi 0, %s21
    %s24 = sphi 0, %s22
    %s25 = sphi 0, %s23
    %s26 = sphi 0, %s24
    %s38 = sphi 0, %s40
    %s41 = sphi 0, %s38
    %s42 = sphi 0, %s41
    %s58 = sphi 0, %s42
    %s66 = sphi 0, %s68
    %s69 = sphi 0, %s66
    %s70 = sphi 0, %s69
    %s86 = sphi 0, %s70
    %s94 = sphi 0, %s96
    %s97 = sphi 0, %s94
    %s98 = sphi 0, %s97
    %s114 = sphi 0, %s98
    %s122 = sphi 0, %s124
    %s125 = sphi 0, %s122
    %s126 = sphi 0, %s125
    %s142 = sphi 0, %s126
    %s150 = sphi 0, %s152
    %s153 = sphi 0, %s150
    %s154 = sphi 0, %s153
    %s170 = sphi 0, %s154
    %s178 = sphi 0, %s180
    %s181 = sphi 0, %s178
    %s182 = sphi 0, %s181
    %s198 = sphi 0, %s182
    %s206 = sphi 0, %s208
    %s209 = sphi 0, %s206
    %s210 = sphi 0, %s209
    %s226 = sphi 0, %s210
    %s234 = sphi 0, %s236
    %s237 = sphi 0, %s234
    %s238 = sphi 0, %s237
    %s254 = sphi 0, %s238
  $region4: #{tpu_custom_call.1} parent=0 // loop_header_branch
    %17 = sbr.rel (%p15) target = $region8
  $region5: #{tpu_custom_call.1} parent=0 // loop_body
    %s19 = ssub.s32 %s14, 1
    %s20 = ssub.s32 %s14, 2
    %s27 = sadd.s32 1, %s22
    %p28 = scmp.ge.s32.totalorder %s27, 1
    %s29 = scalar_select %p28, 0, %s27
    %s30 = sadd.s32 1, %s21
    %s31 = scalar_select %p28, %s30, %s21
    %p32 = scmp.ge.s32.totalorder %s31, 2
    %s33 = scalar_select %p32, 0, %s31
    %s34 = ssub.s32 %s21, %s33
    %s35 = ssub.s32 %s22, %s29
    %s36 = sor.u32 %s34, %s35
    %p37 = scmp.eq.s32.totalorder %s36, 0
    %s39 = sadd.s32 %s38, 1
    %s40 = scalar_select %p37, %s38, %s39
    %p43 = pneg %p37
    %p44 = scmp.eq.s32.totalorder %s14, 1
    %p45 = por %p43, %p44
    %p46 = scmp.ne.s32.totalorder %s38, %s41
    %p47 = scmp.eq.s32.totalorder %s14, 0
    %p48 = por %p46, %p47
    %p49 = scmp.ne.s32.totalorder %s38, %s41
    %p50 = scmp.eq.s32.totalorder %s19, 1
    %p51 = por %p49, %p50
    %p52 = scmp.ne.s32.totalorder %s41, %s42
    %p53 = scmp.eq.s32.totalorder %s19, 0
    %p54 = por %p52, %p53
    %p55 = scmp.ne.s32.totalorder %s41, %s42
    %p56 = scmp.eq.s32.totalorder %s20, 1
    %p57 = por %p55, %p56
    %p59 = scmp.ne.s32.totalorder %s42, %s58
    %p60 = scmp.eq.s32.totalorder %s20, 0
    %p61 = por %p59, %p60
    %s62 = ssub.s32 %s21, %s33
    %s63 = ssub.s32 %s22, %s29
    %s64 = sor.u32 %s62, %s63
    %p65 = scmp.eq.s32.totalorder %s64, 0
    %s67 = sadd.s32 %s66, 1
    %s68 = scalar_select %p65, %s66, %s67
    %p71 = pneg %p65
    %p72 = scmp.eq.s32.totalorder %s14, 1
    %p73 = por %p71, %p72
    %p74 = scmp.ne.s32.totalorder %s66, %s69
    %p75 = scmp.eq.s32.totalorder %s14, 0
    %p76 = por %p74, %p75
    %p77 = scmp.ne.s32.totalorder %s66, %s69
    %p78 = scmp.eq.s32.totalorder %s19, 1
    %p79 = por %p77, %p78
    %p80 = scmp.ne.s32.totalorder %s69, %s70
    %p81 = scmp.eq.s32.totalorder %s19, 0
    %p82 = por %p80, %p81
    %p83 = scmp.ne.s32.totalorder %s69, %s70
    %p84 = scmp.eq.s32.totalorder %s20, 1
    %p85 = por %p83, %p84
    %p87 = scmp.ne.s32.totalorder %s70, %s86
    %p88 = scmp.eq.s32.totalorder %s20, 0
    %p89 = por %p87, %p88
    %s90 = ssub.s32 %s21, %s33
    %s91 = ssub.s32 %s22, %s29
    %s92 = sor.u32 %s90, %s91
    %p93 = scmp.eq.s32.totalorder %s92, 0
    %s95 = sadd.s32 %s94, 1
    %s96 = scalar_select %p93, %s94, %s95
    %p99 = pneg %p93
    %p100 = scmp.eq.s32.totalorder %s14, 1
    %p101 = por %p99, %p100
    %p102 = scmp.ne.s32.totalorder %s94, %s97
    %p103 = scmp.eq.s32.totalorder %s14, 0
    %p104 = por %p102, %p103
    %p105 = scmp.ne.s32.totalorder %s94, %s97
    %p106 = scmp.eq.s32.totalorder %s19, 1
    %p107 = por %p105, %p106
    %p108 = scmp.ne.s32.totalorder %s97, %s98
    %p109 = scmp.eq.s32.totalorder %s19, 0
    %p110 = por %p108, %p109
    %p111 = scmp.ne.s32.totalorder %s97, %s98
    %p112 = scmp.eq.s32.totalorder %s20, 1
    %p113 = por %p111, %p112
    %p115 = scmp.ne.s32.totalorder %s98, %s114
    %p116 = scmp.eq.s32.totalorder %s20, 0
    %p117 = por %p115, %p116
    %s118 = ssub.s32 %s21, %s33
    %s119 = ssub.s32 %s22, %s29
    %s120 = sor.u32 %s118, %s119
    %p121 = scmp.eq.s32.totalorder %s120, 0
    %s123 = sadd.s32 %s122, 1
    %s124 = scalar_select %p121, %s122, %s123
    %p127 = pneg %p121
    %p128 = scmp.eq.s32.totalorder %s14, 1
    %p129 = por %p127, %p128
    %p130 = scmp.ne.s32.totalorder %s122, %s125
    %p131 = scmp.eq.s32.totalorder %s14, 0
    %p132 = por %p130, %p131
    %p133 = scmp.ne.s32.totalorder %s122, %s125
    %p134 = scmp.eq.s32.totalorder %s19, 1
    %p135 = por %p133, %p134
    %p136 = scmp.ne.s32.totalorder %s125, %s126
    %p137 = scmp.eq.s32.totalorder %s19, 0
    %p138 = por %p136, %p137
    %p139 = scmp.ne.s32.totalorder %s125, %s126
    %p140 = scmp.eq.s32.totalorder %s20, 1
    %p141 = por %p139, %p140
    %p143 = scmp.ne.s32.totalorder %s126, %s142
    %p144 = scmp.eq.s32.totalorder %s20, 0
    %p145 = por %p143, %p144
    %s146 = ssub.s32 %s21, %s33
    %s147 = ssub.s32 %s22, %s29
    %s148 = sor.u32 %s146, %s147
    %p149 = scmp.eq.s32.totalorder %s148, 0
    %s151 = sadd.s32 %s150, 1
    %s152 = scalar_select %p149, %s150, %s151
    %p155 = pneg %p149
    %p156 = scmp.eq.s32.totalorder %s14, 1
    %p157 = por %p155, %p156
    %p158 = scmp.ne.s32.totalorder %s150, %s153
    %p159 = scmp.eq.s32.totalorder %s14, 0
    %p160 = por %p158, %p159
    %p161 = scmp.ne.s32.totalorder %s150, %s153
    %p162 = scmp.eq.s32.totalorder %s19, 1
    %p163 = por %p161, %p162
    %p164 = scmp.ne.s32.totalorder %s153, %s154
    %p165 = scmp.eq.s32.totalorder %s19, 0
    %p166 = por %p164, %p165
    %p167 = scmp.ne.s32.totalorder %s153, %s154
    %p168 = scmp.eq.s32.totalorder %s20, 1
    %p169 = por %p167, %p168
    %p171 = scmp.ne.s32.totalorder %s154, %s170
    %p172 = scmp.eq.s32.totalorder %s20, 0
    %p173 = por %p171, %p172
    %s174 = ssub.s32 %s21, %s33
    %s175 = ssub.s32 %s22, %s29
    %s176 = sor.u32 %s174, %s175
    %p177 = scmp.eq.s32.totalorder %s176, 0
    %s179 = sadd.s32 %s178, 1
    %s180 = scalar_select %p177, %s178, %s179
    %p183 = pneg %p177
    %p184 = scmp.eq.s32.totalorder %s14, 1
    %p185 = por %p183, %p184
    %p186 = scmp.ne.s32.totalorder %s178, %s181
    %p187 = scmp.eq.s32.totalorder %s14, 0
    %p188 = por %p186, %p187
    %p189 = scmp.ne.s32.totalorder %s178, %s181
    %p190 = scmp.eq.s32.totalorder %s19, 1
    %p191 = por %p189, %p190
    %p192 = scmp.ne.s32.totalorder %s181, %s182
    %p193 = scmp.eq.s32.totalorder %s19, 0
    %p194 = por %p192, %p193
    %p195 = scmp.ne.s32.totalorder %s181, %s182
    %p196 = scmp.eq.s32.totalorder %s20, 1
    %p197 = por %p195, %p196
    %p199 = scmp.ne.s32.totalorder %s182, %s198
    %p200 = scmp.eq.s32.totalorder %s20, 0
    %p201 = por %p199, %p200
    %s202 = ssub.s32 %s21, %s33
    %s203 = ssub.s32 %s22, %s29
    %s204 = sor.u32 %s202, %s203
    %p205 = scmp.eq.s32.totalorder %s204, 0
    %s207 = sadd.s32 %s206, 1
    %s208 = scalar_select %p205, %s206, %s207
    %p211 = pneg %p205
    %p212 = scmp.eq.s32.totalorder %s14, 1
    %p213 = por %p211, %p212
    %p214 = scmp.ne.s32.totalorder %s206, %s209
    %p215 = scmp.eq.s32.totalorder %s14, 0
    %p216 = por %p214, %p215
    %p217 = scmp.ne.s32.totalorder %s206, %s209
    %p218 = scmp.eq.s32.totalorder %s19, 1
    %p219 = por %p217, %p218
    %p220 = scmp.ne.s32.totalorder %s209, %s210
    %p221 = scmp.eq.s32.totalorder %s19, 0
    %p222 = por %p220, %p221
    %p223 = scmp.ne.s32.totalorder %s209, %s210
    %p224 = scmp.eq.s32.totalorder %s20, 1
    %p225 = por %p223, %p224
    %p227 = scmp.ne.s32.totalorder %s210, %s226
    %p228 = scmp.eq.s32.totalorder %s20, 0
    %p229 = por %p227, %p228
    %s230 = ssub.s32 %s21, %s33
    %s231 = ssub.s32 %s22, %s29
    %s232 = sor.u32 %s230, %s231
    %p233 = scmp.eq.s32.totalorder %s232, 0
    %s235 = sadd.s32 %s234, 1
    %s236 = scalar_select %p233, %s234, %s235
    %p239 = pneg %p233
    %p240 = scmp.eq.s32.totalorder %s14, 1
    %p241 = por %p239, %p240
    %p242 = scmp.ne.s32.totalorder %s234, %s237
    %p243 = scmp.eq.s32.totalorder %s14, 0
    %p244 = por %p242, %p243
    %p245 = scmp.ne.s32.totalorder %s234, %s237
    %p246 = scmp.eq.s32.totalorder %s19, 1
    %p247 = por %p245, %p246
    %p248 = scmp.ne.s32.totalorder %s237, %s238
    %p249 = scmp.eq.s32.totalorder %s19, 0
    %p250 = por %p248, %p249
    %p251 = scmp.ne.s32.totalorder %s237, %s238
    %p252 = scmp.eq.s32.totalorder %s20, 1
    %p253 = por %p251, %p252
    %p255 = scmp.ne.s32.totalorder %s238, %s254
    %p256 = scmp.eq.s32.totalorder %s20, 0
    %p257 = por %p255, %p256
    %p258 = scmp.le.s32.totalorder 1, %s14
    %p259 = scmp.lt.s32.totalorder %s14, 3
    %p260 = pnand %p258, %p259
    %p261 = pneg %p260
    // Predicated region
    $region9: #{tpu_custom_call.1} parent=5 // pred_check
      _
    $region10: #{tpu_custom_call.1} parent=5 // pred_check_branch
      %263 = sbr.rel (%p260) target = $region12
    $region11: #{tpu_custom_call.1} parent=5 // pred_region
      %s264 = ssub.s32 %s14, 1
    $region12: #{tpu_custom_call.1} parent=5 // pred_fallthru
      _
    %p265 = scmp.lt.s32.totalorder %s14, 2
    // Predicated region
    $region13: #{tpu_custom_call.1} parent=5 // pred_check
      %p266 = pneg %p265
    $region14: #{tpu_custom_call.1} parent=5 // pred_check_branch
      %268 = sbr.rel (%p266) target = $region16
    $region15: #{tpu_custom_call.1} parent=5 // pred_region
      // Predicated region
      $region17: #{tpu_custom_call.1} parent=15 // pred_check
        %p269 = pneg %p48
      $region18: #{tpu_custom_call.1} parent=15 // pred_check_branch
        %271 = sbr.rel (%p269) target = $region20
      $region19: #{tpu_custom_call.1} parent=15 // pred_region
        %s272 = smul.u32 4, %s22
        %p273 = scmp.lt.s32.totalorder %s21, 1
        %s274 = scalar_select %p273, %s21, 1
        %p275 = scmp.lt.s32.totalorder %s272, 3
        %s276 = scalar_select %p275, %s272, 3
        %s277 = smul.addr %s274, 4
        %s278 = sadd.s32 %s276, %s277
        %s279 = smul.addr %s278, 8
        %s280 = scalar_lea.vmem %s0, %s279
        %s281 = smul.u32 4, %s22
      $region20: #{tpu_custom_call.1} parent=15 // pred_fallthru
        _
      // Predicated region
      $region21: #{tpu_custom_call.1} parent=15 // pred_check
        %p282 = pneg %p76
      $region22: #{tpu_custom_call.1} parent=15 // pred_check_branch
        %284 = sbr.rel (%p282) target = $region24
      $region23: #{tpu_custom_call.1} parent=15 // pred_region
        %s285 = smul.u32 4, %s22
        %p286 = scmp.lt.s32.totalorder %s21, 1
        %s287 = scalar_select %p286, %s21, 1
        %p288 = scmp.lt.s32.totalorder %s285, 3
        %s289 = scalar_select %p288, %s285, 3
        %s290 = smul.addr %s287, 4
        %s291 = sadd.s32 %s289, %s290
        %s292 = smul.addr %s291, 8
        %s293 = scalar_lea.vmem %s1, %s292
        %s294 = smul.u32 4, %s22
      $region24: #{tpu_custom_call.1} parent=15 // pred_fallthru
        _
      // Predicated region
      $region25: #{tpu_custom_call.1} parent=15 // pred_check
        %p295 = pneg %p104
      $region26: #{tpu_custom_call.1} parent=15 // pred_check_branch
        %297 = sbr.rel (%p295) target = $region28
      $region27: #{tpu_custom_call.1} parent=15 // pred_region
        %s298 = smul.u32 4, %s22
        %p299 = scmp.lt.s32.totalorder %s21, 1
        %s300 = scalar_select %p299, %s21, 1
        %p301 = scmp.lt.s32.totalorder %s298, 3
        %s302 = scalar_select %p301, %s298, 3
        %s303 = smul.addr %s300, 4
        %s304 = sadd.s32 %s302, %s303
        %s305 = smul.addr %s304, 8
        %s306 = scalar_lea.vmem %s2, %s305
        %s307 = smul.u32 4, %s22
      $region28: #{tpu_custom_call.1} parent=15 // pred_fallthru
        _
      // Predicated region
      $region29: #{tpu_custom_call.1} parent=15 // pred_check
        %p308 = pneg %p132
      $region30: #{tpu_custom_call.1} parent=15 // pred_check_branch
        %310 = sbr.rel (%p308) target = $region32
      $region31: #{tpu_custom_call.1} parent=15 // pred_region
        %s311 = smul.u32 4, %s22
        %p312 = scmp.lt.s32.totalorder %s21, 1
        %s313 = scalar_select %p312, %s21, 1
        %p314 = scmp.lt.s32.totalorder %s311, 3
        %s315 = scalar_select %p314, %s311, 3
        %s316 = smul.addr %s313, 4
        %s317 = sadd.s32 %s315, %s316
        %s318 = smul.addr %s317, 8
        %s319 = scalar_lea.vmem %s3, %s318
        %s320 = smul.u32 4, %s22
      $region32: #{tpu_custom_call.1} parent=15 // pred_fallthru
        _
      // Predicated region
      $region33: #{tpu_custom_call.1} parent=15 // pred_check
        %p321 = pneg %p160
      $region34: #{tpu_custom_call.1} parent=15 // pred_check_branch
        %323 = sbr.rel (%p321) target = $region36
      $region35: #{tpu_custom_call.1} parent=15 // pred_region
        %s324 = smul.u32 4, %s22
        %p325 = scmp.lt.s32.totalorder %s21, 1
        %s326 = scalar_select %p325, %s21, 1
        %p327 = scmp.lt.s32.totalorder %s324, 3
        %s328 = scalar_select %p327, %s324, 3
        %s329 = smul.addr %s326, 4
        %s330 = sadd.s32 %s328, %s329
        %s331 = smul.addr %s330, 8
        %s332 = scalar_lea.vmem %s4, %s331
        %s333 = smul.u32 4, %s22
      $region36: #{tpu_custom_call.1} parent=15 // pred_fallthru
        _
      // Predicated region
      $region37: #{tpu_custom_call.1} parent=15 // pred_check
        %p334 = pneg %p188
      $region38: #{tpu_custom_call.1} parent=15 // pred_check_branch
        %336 = sbr.rel (%p334) target = $region40
      $region39: #{tpu_custom_call.1} parent=15 // pred_region
        %s337 = smul.u32 4, %s22
        %p338 = scmp.lt.s32.totalorder %s21, 1
        %s339 = scalar_select %p338, %s21, 1
        %p340 = scmp.lt.s32.totalorder %s337, 3
        %s341 = scalar_select %p340, %s337, 3
        %s342 = smul.addr %s339, 4
        %s343 = sadd.s32 %s341, %s342
        %s344 = smul.addr %s343, 8
        %s345 = scalar_lea.vmem %s5, %s344
        %s346 = smul.u32 4, %s22
      $region40: #{tpu_custom_call.1} parent=15 // pred_fallthru
        _
    $region16: #{tpu_custom_call.1} parent=5 // pred_fallthru
      _
    %p347 = scmp.le.s32.totalorder 1, %s14
    %p348 = scmp.lt.s32.totalorder %s14, 3
    %p349 = pnand %p347, %p348
    %p350 = pneg %p349
    // Predicated region
    $region41: #{tpu_custom_call.1} parent=5 // pred_check
      _
    $region42: #{tpu_custom_call.1} parent=5 // pred_check_branch
      %352 = sbr.rel (%p349) target = $region44
    $region43: #{tpu_custom_call.1} parent=5 // pred_region
      %s353 = ssub.s32 %s14, 1
      %s354 = smul.u32 4, %s24
      %p355 = scmp.lt.s32.totalorder %s23, 1
      %s356 = scalar_select %p355, %s23, 1
      %p357 = scmp.lt.s32.totalorder %s354, 3
      %s358 = scalar_select %p357, %s354, 3
      %s359 = smul.addr %s356, 4
      %s360 = sadd.s32 %s358, %s359
      %s361 = smul.addr %s360, 8
      %s362 = scalar_lea.vmem %s0, %s361
      %p363 = pneg %p54
      %p364 = pneg %p51
      %s365 = smul.u32 4, %s24
      %p366 = scmp.lt.s32.totalorder %s23, 1
      %s367 = scalar_select %p366, %s23, 1
      %p368 = scmp.lt.s32.totalorder %s365, 3
      %s369 = scalar_select %p368, %s365, 3
      %s370 = smul.addr %s367, 4
      %s371 = sadd.s32 %s369, %s370
      %s372 = smul.addr %s371, 8
      %s373 = scalar_lea.vmem %s1, %s372
      %p374 = pneg %p82
      %p375 = pneg %p79
      %s376 = smul.u32 4, %s24
      %p377 = scmp.lt.s32.totalorder %s23, 1
      %s378 = scalar_select %p377, %s23, 1
      %p379 = scmp.lt.s32.totalorder %s376, 3
      %s380 = scalar_select %p379, %s376, 3
      %s381 = smul.addr %s378, 4
      %s382 = sadd.s32 %s380, %s381
      %s383 = smul.addr %s382, 8
      %s384 = scalar_lea.vmem %s2, %s383
      %p385 = pneg %p110
      %p386 = pneg %p107
      %s387 = smul.u32 4, %s24
      %p388 = scmp.lt.s32.totalorder %s23, 1
      %s389 = scalar_select %p388, %s23, 1
      %p390 = scmp.lt.s32.totalorder %s387, 3
      %s391 = scalar_select %p390, %s387, 3
      %s392 = smul.addr %s389, 4
      %s393 = sadd.s32 %s391, %s392
      %s394 = smul.addr %s393, 8
      %s395 = scalar_lea.vmem %s3, %s394
      %p396 = pneg %p138
      %p397 = pneg %p135
      %s398 = smul.u32 4, %s24
      %p399 = scmp.lt.s32.totalorder %s23, 1
      %s400 = scalar_select %p399, %s23, 1
      %p401 = scmp.lt.s32.totalorder %s398, 3
      %s402 = scalar_select %p401, %s398, 3
      %s403 = smul.addr %s400, 4
      %s404 = sadd.s32 %s402, %s403
      %s405 = smul.addr %s404, 8
      %s406 = scalar_lea.vmem %s4, %s405
      %p407 = pneg %p166
      %p408 = pneg %p163
      %s409 = smul.u32 4, %s24
      %p410 = scmp.lt.s32.totalorder %s23, 1
      %s411 = scalar_select %p410, %s23, 1
      %p412 = scmp.lt.s32.totalorder %s409, 3
      %s413 = scalar_select %p412, %s409, 3
      %s414 = smul.addr %s411, 4
      %s415 = sadd.s32 %s413, %s414
      %s416 = smul.addr %s415, 8
      %s417 = scalar_lea.vmem %s5, %s416
      %p418 = pneg %p194
      %p419 = pneg %p191
      %p420 = pneg %p222
      %p421 = pneg %p219
      %s422 = smul.u32 4, %s24
      %p423 = scmp.lt.s32.totalorder %s23, 1
      %s424 = scalar_select %p423, %s23, 1
      %p425 = scmp.lt.s32.totalorder %s422, 3
      %s426 = scalar_select %p425, %s422, 3
      %s427 = smul.addr %s424, 4
      %s428 = sadd.s32 %s426, %s427
      %s429 = smul.addr %s428, 8
      %s430 = scalar_lea.vmem %s6, %s429
      %p431 = pneg %p250
      %p432 = pneg %p247
      %s433 = smul.u32 4, %s24
      %p434 = scmp.lt.s32.totalorder %s23, 1
      %s435 = scalar_select %p434, %s23, 1
      %p436 = scmp.lt.s32.totalorder %s433, 3
      %s437 = scalar_select %p436, %s433, 3
      %s438 = smul.addr %s435, 4
      %s439 = sadd.s32 %s437, %s438
      %s440 = smul.addr %s439, 8
      %s441 = scalar_lea.vmem %s7, %s440
      %s442 = smul.u32 4, %s24
      %p443 = scmp.lt.s32.totalorder %s23, 1
      %s444 = scalar_select %p443, %s23, 1
      %p445 = scmp.lt.s32.totalorder %s442, 3
      %s446 = scalar_select %p445, %s442, 3
      %s447 = smul.addr %s444, 4
      %s448 = sadd.s32 %s446, %s447
      %s449 = smul.addr %s448, 8
      %s450 = scalar_lea.vmem %s0, %s449
      %s451 = smul.u32 4, %s24
      %s452 = smul.u32 4, %s24
      %p453 = scmp.lt.s32.totalorder %s23, 1
      %s454 = scalar_select %p453, %s23, 1
      %p455 = scmp.lt.s32.totalorder %s452, 3
      %s456 = scalar_select %p455, %s452, 3
      %s457 = smul.addr %s454, 4
      %s458 = sadd.s32 %s456, %s457
      %s459 = smul.addr %s458, 8
      %s460 = scalar_lea.vmem %s1, %s459
      %s461 = smul.u32 4, %s24
      %s462 = smul.u32 4, %s24
      %p463 = scmp.lt.s32.totalorder %s23, 1
      %s464 = scalar_select %p463, %s23, 1
      %p465 = scmp.lt.s32.totalorder %s462, 3
      %s466 = scalar_select %p465, %s462, 3
      %s467 = smul.addr %s464, 4
      %s468 = sadd.s32 %s466, %s467
      %s469 = smul.addr %s468, 8
      %s470 = scalar_lea.vmem %s2, %s469
      %s471 = smul.u32 4, %s24
      %s472 = smul.u32 4, %s24
      %p473 = scmp.lt.s32.totalorder %s23, 1
      %s474 = scalar_select %p473, %s23, 1
      %p475 = scmp.lt.s32.totalorder %s472, 3
      %s476 = scalar_select %p475, %s472, 3
      %s477 = smul.addr %s474, 4
      %s478 = sadd.s32 %s476, %s477
      %s479 = smul.addr %s478, 8
      %s480 = scalar_lea.vmem %s3, %s479
      %s481 = smul.u32 4, %s24
      %s482 = smul.u32 4, %s24
      %p483 = scmp.lt.s32.totalorder %s23, 1
      %s484 = scalar_select %p483, %s23, 1
      %p485 = scmp.lt.s32.totalorder %s482, 3
      %s486 = scalar_select %p485, %s482, 3
      %s487 = smul.addr %s484, 4
      %s488 = sadd.s32 %s486, %s487
      %s489 = smul.addr %s488, 8
      %s490 = scalar_lea.vmem %s4, %s489
      %s491 = smul.u32 4, %s24
      %s492 = smul.u32 4, %s24
      %p493 = scmp.lt.s32.totalorder %s23, 1
      %s494 = scalar_select %p493, %s23, 1
      %p495 = scmp.lt.s32.totalorder %s492, 3
      %s496 = scalar_select %p495, %s492, 3
      %s497 = smul.addr %s494, 4
      %s498 = sadd.s32 %s496, %s497
      %s499 = smul.addr %s498, 8
      %s500 = scalar_lea.vmem %s5, %s499
      %s501 = smul.u32 4, %s24
      %s502 = smul.u32 4, %s24
      %p503 = scmp.lt.s32.totalorder %s23, 1
      %s504 = scalar_select %p503, %s23, 1
      %p505 = scmp.lt.s32.totalorder %s502, 3
      %s506 = scalar_select %p505, %s502, 3
      %s507 = smul.addr %s504, 4
      %s508 = sadd.s32 %s506, %s507
      %s509 = smul.addr %s508, 8
      %s510 = scalar_lea.vmem %s6, %s509
      %s511 = smul.u32 4, %s24
      %s512 = smul.u32 4, %s24
      %p513 = scmp.lt.s32.totalorder %s23, 1
      %s514 = scalar_select %p513, %s23, 1
      %p515 = scmp.lt.s32.totalorder %s512, 3
      %s516 = scalar_select %p515, %s512, 3
      %s517 = smul.addr %s514, 4
      %s518 = sadd.s32 %s516, %s517
      %s519 = smul.addr %s518, 8
      %s520 = scalar_lea.vmem %s7, %s519
      %s521 = smul.u32 4, %s24
      %p522 = scmp.eq.s32.totalorder %s24, 0
      // Predicated region
      $region45: #{tpu_custom_call.1} parent=43 // pred_check
        %p523 = pneg %p522
      $region46: #{tpu_custom_call.1} parent=43 // pred_check_branch
        %525 = sbr.rel (%p523) target = $region48
      $region47: #{tpu_custom_call.1} parent=43 // pred_region
        %v526 = vlaneseq
        %v527 = vand.u32 %v526, 127
        %vm528 = vcmp.eq.s32.totalorder %v527, 5
        %v529 = vsel %vm528, 1.0, 0.0
        %vm530 = vcmask 172032
        %531 = vst.msk [vmem:[#allocation2] sm:$0x1] %vm530, %v529
        %532 = vst.msk [vmem:[#allocation3] sm:$0x1] %vm530, 0.0
        %533 = vst.msk [vmem:[#allocation4] sm:$0x1] %vm530, 0.0
        %534 = vst.msk [vmem:[#allocation5] sm:$0x1] %vm530, 0.0
      $region48: #{tpu_custom_call.1} parent=43 // pred_fallthru
        _
      %v535 = vld [vmem:[#allocation2] sm:$0x1]
      %v536 = vld [vmem:[#allocation3] sm:$0x1]
      %v537 = vld [vmem:[#allocation4] sm:$0x1]
      %v538 = vld [vmem:[#allocation5] sm:$0x1]
      loop: start=0, step=1, limit=4
      $region49: #{tpu_custom_call.1} parent=43 // loop_pre_header
        _
      $region50: #{tpu_custom_call.1} parent=43 // loop_header
        %s540 = sphi 0, %s544
        %p541 = scmp.ge.s32.totalorder %s540, 4
        %v545 = vphi %v535, %v955
        %v546 = vphi %v536, %v957
        %v547 = vphi %v537, %v946
        %v548 = vphi %v538, %v949
      $region51: #{tpu_custom_call.1} parent=43 // loop_header_branch
        %543 = sbr.rel (%p541) target = $region55
      $region52: #{tpu_custom_call.1} parent=43 // loop_body
        %s549 = smul.u32 %s540, 8
        %s550 = scalar_lea.vmem %s450, %s549
        %v551 = vld [vmem:[%s550] sm:$0x1]
        %s552 = scalar_lea.vmem %s460, %s549
        %v553 = vld [vmem:[%s552] sm:$0x1]
        %v554 = vmul.f32 %v545, %v551
        %v555 = vmul.f32 %v546, %v553
        %v556 = vsub.f32 %v554, %v555
        %v557 = vmul.f32 %v545, %v553
        %v558 = vmul.f32 %v546, %v551
        %v559 = vadd.f32 %v557, %v558
        %vm560 = vcmask 172032
        %v561 = vsel %vm560, %v556, 0.0
        %562 = vadd.xlane.f32.xlu0 %v561
        %v563 = vpop.xlane.xlu0 %562
        %v564 = vsel %vm560, %v559, 0.0
        %565 = vadd.xlane.f32.xlu0 %v564
        %v566 = vpop.xlane.xlu0 %565
        %s567 = scalar_lea.vmem %s490, %s549
        %v568 = vld [vmem:[%s567] sm:$0x1]
        %v569 = vsub.f32 %v568, %v563
        %s570 = scalar_lea.vmem %s500, %s549
        %v571 = vld [vmem:[%s570] sm:$0x1]
        %v572 = vsub.f32 %v571, %v566
        %s573 = scalar_lea.vmem %s470, %s549
        %v574 = vld [vmem:[%s573] sm:$0x1]
        %s575 = scalar_lea.vmem %s480, %s549
        %v576 = vld [vmem:[%s575] sm:$0x1]
        %578 = vset.pattern.permute.xlu0 0
        %579 = vperm.xlu0 %578, %v569
        %v580 = vpop.permute.xlu0 %579
        %v582 = vmul.f32 %v580, %v574
        %584 = vset.pattern.permute.xlu0 0
        %585 = vperm.xlu0 %584, %v572
        %v586 = vpop.permute.xlu0 %585
        %v588 = vmul.f32 %v586, %v576
        %v589 = vsub.f32 %v582, %v588
        %v590 = vmul.f32 %v580, %v576
        %v591 = vmul.f32 %v586, %v574
        %v592 = vadd.f32 %v590, %v591
        %s593 = scalar_lea.vmem %s510, %s549
        %594 = vst.msk [vmem:[%s593] sm:$0x1] %vm560, %v589
        %s595 = scalar_lea.vmem %s520, %s549
        %596 = vst.msk [vmem:[%s595] sm:$0x1] %vm560, %v592
        %v597 = vmul.f32 %v547, 0.01
        %v598 = vadd.f32 %v545, %v597
        %v599 = vmul.f32 %v548, 0.01
        %v600 = vadd.f32 %v546, %v599
        %s601 = sadd.s32 %s549, 1
        %s602 = scalar_lea.vmem %s450, %s601
        %v603 = vld [vmem:[%s602] sm:$0x1]
        %s604 = scalar_lea.vmem %s460, %s601
        %v605 = vld [vmem:[%s604] sm:$0x1]
        %v606 = vmul.f32 %v598, %v603
        %v607 = vmul.f32 %v600, %v605
        %v608 = vsub.f32 %v606, %v607
        %v609 = vmul.f32 %v598, %v605
        %v610 = vmul.f32 %v600, %v603
        %v611 = vadd.f32 %v609, %v610
        %v612 = vsel %vm560, %v608, 0.0
        %613 = vadd.xlane.f32.xlu0 %v612
        %v614 = vpop.xlane.xlu0 %613
        %v615 = vsel %vm560, %v611, 0.0
        %616 = vadd.xlane.f32.xlu0 %v615
        %v617 = vpop.xlane.xlu0 %616
        %s618 = scalar_lea.vmem %s490, %s601
        %v619 = vld [vmem:[%s618] sm:$0x1]
        %v620 = vsub.f32 %v619, %v614
        %s621 = scalar_lea.vmem %s500, %s601
        %v622 = vld [vmem:[%s621] sm:$0x1]
        %v623 = vsub.f32 %v622, %v617
        %s624 = scalar_lea.vmem %s470, %s601
        %v625 = vld [vmem:[%s624] sm:$0x1]
        %s626 = scalar_lea.vmem %s480, %s601
        %v627 = vld [vmem:[%s626] sm:$0x1]
        %629 = vset.pattern.permute.xlu0 0
        %630 = vperm.xlu0 %629, %v620
        %v631 = vpop.permute.xlu0 %630
        %v633 = vmul.f32 %v631, %v625
        %635 = vset.pattern.permute.xlu0 0
        %636 = vperm.xlu0 %635, %v623
        %v637 = vpop.permute.xlu0 %636
        %v639 = vmul.f32 %v637, %v627
        %v640 = vsub.f32 %v633, %v639
        %v641 = vmul.f32 %v631, %v627
        %v642 = vmul.f32 %v637, %v625
        %v643 = vadd.f32 %v641, %v642
        %s644 = scalar_lea.vmem %s510, %s601
        %645 = vst.msk [vmem:[%s644] sm:$0x1] %vm560, %v640
        %s646 = scalar_lea.vmem %s520, %s601
        %647 = vst.msk [vmem:[%s646] sm:$0x1] %vm560, %v643
        %v648 = vmul.f32 %v589, 0.01
        %v649 = vadd.f32 %v598, %v648
        %v650 = vmul.f32 %v592, 0.01
        %v651 = vadd.f32 %v600, %v650
        %s652 = sadd.s32 %s549, 2
        %s653 = scalar_lea.vmem %s450, %s652
        %v654 = vld [vmem:[%s653] sm:$0x1]
        %s655 = scalar_lea.vmem %s460, %s652
        %v656 = vld [vmem:[%s655] sm:$0x1]
        %v657 = vmul.f32 %v649, %v654
        %v658 = vmul.f32 %v651, %v656
        %v659 = vsub.f32 %v657, %v658
        %v660 = vmul.f32 %v649, %v656
        %v661 = vmul.f32 %v651, %v654
        %v662 = vadd.f32 %v660, %v661
        %v663 = vsel %vm560, %v659, 0.0
        %664 = vadd.xlane.f32.xlu0 %v663
        %v665 = vpop.xlane.xlu0 %664
        %v666 = vsel %vm560, %v662, 0.0
        %667 = vadd.xlane.f32.xlu0 %v666
        %v668 = vpop.xlane.xlu0 %667
        %s669 = scalar_lea.vmem %s490, %s652
        %v670 = vld [vmem:[%s669] sm:$0x1]
        %v671 = vsub.f32 %v670, %v665
        %s672 = scalar_lea.vmem %s500, %s652
        %v673 = vld [vmem:[%s672] sm:$0x1]
        %v674 = vsub.f32 %v673, %v668
        %s675 = scalar_lea.vmem %s470, %s652
        %v676 = vld [vmem:[%s675] sm:$0x1]
        %s677 = scalar_lea.vmem %s480, %s652
        %v678 = vld [vmem:[%s677] sm:$0x1]
        %680 = vset.pattern.permute.xlu0 0
        %681 = vperm.xlu0 %680, %v671
        %v682 = vpop.permute.xlu0 %681
        %v684 = vmul.f32 %v682, %v676
        %686 = vset.pattern.permute.xlu0 0
        %687 = vperm.xlu0 %686, %v674
        %v688 = vpop.permute.xlu0 %687
        %v690 = vmul.f32 %v688, %v678
        %v691 = vsub.f32 %v684, %v690
        %v692 = vmul.f32 %v682, %v678
        %v693 = vmul.f32 %v688, %v676
        %v694 = vadd.f32 %v692, %v693
        %s695 = scalar_lea.vmem %s510, %s652
        %696 = vst.msk [vmem:[%s695] sm:$0x1] %vm560, %v691
        %s697 = scalar_lea.vmem %s520, %s652
        %698 = vst.msk [vmem:[%s697] sm:$0x1] %vm560, %v694
        %v699 = vmul.f32 %v640, 0.01
        %v700 = vadd.f32 %v649, %v699
        %v701 = vmul.f32 %v643, 0.01
        %v702 = vadd.f32 %v651, %v701
        %s703 = sadd.s32 %s549, 3
        %s704 = scalar_lea.vmem %s450, %s703
        %v705 = vld [vmem:[%s704] sm:$0x1]
        %s706 = scalar_lea.vmem %s460, %s703
        %v707 = vld [vmem:[%s706] sm:$0x1]
        %v708 = vmul.f32 %v700, %v705
        %v709 = vmul.f32 %v702, %v707
        %v710 = vsub.f32 %v708, %v709
        %v711 = vmul.f32 %v700, %v707
        %v712 = vmul.f32 %v702, %v705
        %v713 = vadd.f32 %v711, %v712
        %v714 = vsel %vm560, %v710, 0.0
        %715 = vadd.xlane.f32.xlu0 %v714
        %v716 = vpop.xlane.xlu0 %715
        %v717 = vsel %vm560, %v713, 0.0
        %718 = vadd.xlane.f32.xlu0 %v717
        %v719 = vpop.xlane.xlu0 %718
        %s720 = scalar_lea.vmem %s490, %s703
        %v721 = vld [vmem:[%s720] sm:$0x1]
        %v722 = vsub.f32 %v721, %v716
        %s723 = scalar_lea.vmem %s500, %s703
        %v724 = vld [vmem:[%s723] sm:$0x1]
        %v725 = vsub.f32 %v724, %v719
        %s726 = scalar_lea.vmem %s470, %s703
        %v727 = vld [vmem:[%s726] sm:$0x1]
        %s728 = scalar_lea.vmem %s480, %s703
        %v729 = vld [vmem:[%s728] sm:$0x1]
        %731 = vset.pattern.permute.xlu0 0
        %732 = vperm.xlu0 %731, %v722
        %v733 = vpop.permute.xlu0 %732
        %v735 = vmul.f32 %v733, %v727
        %737 = vset.pattern.permute.xlu0 0
        %738 = vperm.xlu0 %737, %v725
        %v739 = vpop.permute.xlu0 %738
        %v741 = vmul.f32 %v739, %v729
        %v742 = vsub.f32 %v735, %v741
        %v743 = vmul.f32 %v733, %v729
        %v744 = vmul.f32 %v739, %v727
        %v745 = vadd.f32 %v743, %v744
        %s746 = scalar_lea.vmem %s510, %s703
        %747 = vst.msk [vmem:[%s746] sm:$0x1] %vm560, %v742
        %s748 = scalar_lea.vmem %s520, %s703
        %749 = vst.msk [vmem:[%s748] sm:$0x1] %vm560, %v745
        %v750 = vmul.f32 %v691, 0.01
        %v751 = vadd.f32 %v700, %v750
        %v752 = vmul.f32 %v694, 0.01
        %v753 = vadd.f32 %v702, %v752
        %s754 = sadd.s32 %s549, 4
        %s755 = scalar_lea.vmem %s450, %s754
        %v756 = vld [vmem:[%s755] sm:$0x1]
        %s757 = scalar_lea.vmem %s460, %s754
        %v758 = vld [vmem:[%s757] sm:$0x1]
        %v759 = vmul.f32 %v751, %v756
        %v760 = vmul.f32 %v753, %v758
        %v761 = vsub.f32 %v759, %v760
        %v762 = vmul.f32 %v751, %v758
        %v763 = vmul.f32 %v753, %v756
        %v764 = vadd.f32 %v762, %v763
        %v765 = vsel %vm560, %v761, 0.0
        %766 = vadd.xlane.f32.xlu0 %v765
        %v767 = vpop.xlane.xlu0 %766
        %v768 = vsel %vm560, %v764, 0.0
        %769 = vadd.xlane.f32.xlu0 %v768
        %v770 = vpop.xlane.xlu0 %769
        %s771 = scalar_lea.vmem %s490, %s754
        %v772 = vld [vmem:[%s771] sm:$0x1]
        %v773 = vsub.f32 %v772, %v767
        %s774 = scalar_lea.vmem %s500, %s754
        %v775 = vld [vmem:[%s774] sm:$0x1]
        %v776 = vsub.f32 %v775, %v770
        %s777 = scalar_lea.vmem %s470, %s754
        %v778 = vld [vmem:[%s777] sm:$0x1]
        %s779 = scalar_lea.vmem %s480, %s754
        %v780 = vld [vmem:[%s779] sm:$0x1]
        %782 = vset.pattern.permute.xlu0 0
        %783 = vperm.xlu0 %782, %v773
        %v784 = vpop.permute.xlu0 %783
        %v786 = vmul.f32 %v784, %v778
        %788 = vset.pattern.permute.xlu0 0
        %789 = vperm.xlu0 %788, %v776
        %v790 = vpop.permute.xlu0 %789
        %v792 = vmul.f32 %v790, %v780
        %v793 = vsub.f32 %v786, %v792
        %v794 = vmul.f32 %v784, %v780
        %v795 = vmul.f32 %v790, %v778
        %v796 = vadd.f32 %v794, %v795
        %s797 = scalar_lea.vmem %s510, %s754
        %798 = vst.msk [vmem:[%s797] sm:$0x1] %vm560, %v793
        %s799 = scalar_lea.vmem %s520, %s754
        %800 = vst.msk [vmem:[%s799] sm:$0x1] %vm560, %v796
        %v801 = vmul.f32 %v742, 0.01
        %v802 = vadd.f32 %v751, %v801
        %v803 = vmul.f32 %v745, 0.01
        %v804 = vadd.f32 %v753, %v803
        %s805 = sadd.s32 %s549, 5
        %s806 = scalar_lea.vmem %s450, %s805
        %v807 = vld [vmem:[%s806] sm:$0x1]
        %s808 = scalar_lea.vmem %s460, %s805
        %v809 = vld [vmem:[%s808] sm:$0x1]
        %v810 = vmul.f32 %v802, %v807
        %v811 = vmul.f32 %v804, %v809
        %v812 = vsub.f32 %v810, %v811
        %v813 = vmul.f32 %v802, %v809
        %v814 = vmul.f32 %v804, %v807
        %v815 = vadd.f32 %v813, %v814
        %v816 = vsel %vm560, %v812, 0.0
        %817 = vadd.xlane.f32.xlu0 %v816
        %v818 = vpop.xlane.xlu0 %817
        %v819 = vsel %vm560, %v815, 0.0
        %820 = vadd.xlane.f32.xlu0 %v819
        %v821 = vpop.xlane.xlu0 %820
        %s822 = scalar_lea.vmem %s490, %s805
        %v823 = vld [vmem:[%s822] sm:$0x1]
        %v824 = vsub.f32 %v823, %v818
        %s825 = scalar_lea.vmem %s500, %s805
        %v826 = vld [vmem:[%s825] sm:$0x1]
        %v827 = vsub.f32 %v826, %v821
        %s828 = scalar_lea.vmem %s470, %s805
        %v829 = vld [vmem:[%s828] sm:$0x1]
        %s830 = scalar_lea.vmem %s480, %s805
        %v831 = vld [vmem:[%s830] sm:$0x1]
        %833 = vset.pattern.permute.xlu0 0
        %834 = vperm.xlu0 %833, %v824
        %v835 = vpop.permute.xlu0 %834
        %v837 = vmul.f32 %v835, %v829
        %839 = vset.pattern.permute.xlu0 0
        %840 = vperm.xlu0 %839, %v827
        %v841 = vpop.permute.xlu0 %840
        %v843 = vmul.f32 %v841, %v831
        %v844 = vsub.f32 %v837, %v843
        %v845 = vmul.f32 %v835, %v831
        %v846 = vmul.f32 %v841, %v829
        %v847 = vadd.f32 %v845, %v846
        %s848 = scalar_lea.vmem %s510, %s805
        %849 = vst.msk [vmem:[%s848] sm:$0x1] %vm560, %v844
        %s850 = scalar_lea.vmem %s520, %s805
        %851 = vst.msk [vmem:[%s850] sm:$0x1] %vm560, %v847
        %v852 = vmul.f32 %v793, 0.01
        %v853 = vadd.f32 %v802, %v852
        %v854 = vmul.f32 %v796, 0.01
        %v855 = vadd.f32 %v804, %v854
        %s856 = sadd.s32 %s549, 6
        %s857 = scalar_lea.vmem %s450, %s856
        %v858 = vld [vmem:[%s857] sm:$0x1]
        %s859 = scalar_lea.vmem %s460, %s856
        %v860 = vld [vmem:[%s859] sm:$0x1]
        %v861 = vmul.f32 %v853, %v858
        %v862 = vmul.f32 %v855, %v860
        %v863 = vsub.f32 %v861, %v862
        %v864 = vmul.f32 %v853, %v860
        %v865 = vmul.f32 %v855, %v858
        %v866 = vadd.f32 %v864, %v865
        %v867 = vsel %vm560, %v863, 0.0
        %868 = vadd.xlane.f32.xlu0 %v867
        %v869 = vpop.xlane.xlu0 %868
        %v870 = vsel %vm560, %v866, 0.0
        %871 = vadd.xlane.f32.xlu0 %v870
        %v872 = vpop.xlane.xlu0 %871
        %s873 = scalar_lea.vmem %s490, %s856
        %v874 = vld [vmem:[%s873] sm:$0x1]
        %v875 = vsub.f32 %v874, %v869
        %s876 = scalar_lea.vmem %s500, %s856
        %v877 = vld [vmem:[%s876] sm:$0x1]
        %v878 = vsub.f32 %v877, %v872
        %s879 = scalar_lea.vmem %s470, %s856
        %v880 = vld [vmem:[%s879] sm:$0x1]
        %s881 = scalar_lea.vmem %s480, %s856
        %v882 = vld [vmem:[%s881] sm:$0x1]
        %884 = vset.pattern.permute.xlu0 0
        %885 = vperm.xlu0 %884, %v875
        %v886 = vpop.permute.xlu0 %885
        %v888 = vmul.f32 %v886, %v880
        %890 = vset.pattern.permute.xlu0 0
        %891 = vperm.xlu0 %890, %v878
        %v892 = vpop.permute.xlu0 %891
        %v894 = vmul.f32 %v892, %v882
        %v895 = vsub.f32 %v888, %v894
        %v896 = vmul.f32 %v886, %v882
        %v897 = vmul.f32 %v892, %v880
        %v898 = vadd.f32 %v896, %v897
        %s899 = scalar_lea.vmem %s510, %s856
        %900 = vst.msk [vmem:[%s899] sm:$0x1] %vm560, %v895
        %s901 = scalar_lea.vmem %s520, %s856
        %902 = vst.msk [vmem:[%s901] sm:$0x1] %vm560, %v898
        %v903 = vmul.f32 %v844, 0.01
        %v904 = vadd.f32 %v853, %v903
        %v905 = vmul.f32 %v847, 0.01
        %v906 = vadd.f32 %v855, %v905
        %s907 = sadd.s32 %s549, 7
        %s908 = scalar_lea.vmem %s450, %s907
        %v909 = vld [vmem:[%s908] sm:$0x1]
        %s910 = scalar_lea.vmem %s460, %s907
        %v911 = vld [vmem:[%s910] sm:$0x1]
        %v912 = vmul.f32 %v904, %v909
        %v913 = vmul.f32 %v906, %v911
        %v914 = vsub.f32 %v912, %v913
        %v915 = vmul.f32 %v904, %v911
        %v916 = vmul.f32 %v906, %v909
        %v917 = vadd.f32 %v915, %v916
        %v918 = vsel %vm560, %v914, 0.0
        %919 = vadd.xlane.f32.xlu0 %v918
        %v920 = vpop.xlane.xlu0 %919
        %v921 = vsel %vm560, %v917, 0.0
        %922 = vadd.xlane.f32.xlu0 %v921
        %v923 = vpop.xlane.xlu0 %922
        %s924 = scalar_lea.vmem %s490, %s907
        %v925 = vld [vmem:[%s924] sm:$0x1]
        %v926 = vsub.f32 %v925, %v920
        %s927 = scalar_lea.vmem %s500, %s907
        %v928 = vld [vmem:[%s927] sm:$0x1]
        %v929 = vsub.f32 %v928, %v923
        %s930 = scalar_lea.vmem %s470, %s907
        %v931 = vld [vmem:[%s930] sm:$0x1]
        %s932 = scalar_lea.vmem %s480, %s907
        %v933 = vld [vmem:[%s932] sm:$0x1]
        %935 = vset.pattern.permute.xlu0 0
        %936 = vperm.xlu0 %935, %v926
        %v937 = vpop.permute.xlu0 %936
        %v939 = vmul.f32 %v937, %v931
        %941 = vset.pattern.permute.xlu0 0
        %942 = vperm.xlu0 %941, %v929
        %v943 = vpop.permute.xlu0 %942
        %v945 = vmul.f32 %v943, %v933
        %v946 = vsub.f32 %v939, %v945
        %v947 = vmul.f32 %v937, %v933
        %v948 = vmul.f32 %v943, %v931
        %v949 = vadd.f32 %v947, %v948
        %s950 = scalar_lea.vmem %s510, %s907
        %951 = vst.msk [vmem:[%s950] sm:$0x1] %vm560, %v946
        %s952 = scalar_lea.vmem %s520, %s907
        %953 = vst.msk [vmem:[%s952] sm:$0x1] %vm560, %v949
        %v954 = vmul.f32 %v895, 0.01
        %v955 = vadd.f32 %v904, %v954
        %v956 = vmul.f32 %v898, 0.01
        %v957 = vadd.f32 %v906, %v956
      $region53: #{tpu_custom_call.1} parent=43 // loop_footer
        %s544 = sadd.s32 1, %s540
      $region54: #{tpu_custom_call.1} parent=43 // loop_footer_branch
        %539 = sbr.rel target = $region50
      $region55: #{tpu_custom_call.1} parent=43 // loop_exit
        _
      %vm958 = vcmask 172032
      %959 = vst.msk [vmem:[#allocation2] sm:$0x1] %vm958, %v545
      %960 = vst.msk [vmem:[#allocation3] sm:$0x1] %vm958, %v546
      %961 = vst.msk [vmem:[#allocation4] sm:$0x1] %vm958, %v547
      %962 = vst.msk [vmem:[#allocation5] sm:$0x1] %vm958, %v548
      %s963 = smul.u32 4, %s24
      %p964 = scmp.lt.s32.totalorder %s23, 1
      %s965 = scalar_select %p964, %s23, 1
      %p966 = scmp.lt.s32.totalorder %s963, 3
      %s967 = scalar_select %p966, %s963, 3
      %s968 = smul.addr %s965, 4
      %s969 = sadd.s32 %s967, %s968
      %s970 = smul.addr %s969, 8
      %s971 = scalar_lea.vmem %s6, %s970
      %s972 = smul.u32 4, %s24
      %p973 = scmp.lt.s32.totalorder %s23, 1
      %s974 = scalar_select %p973, %s23, 1
      %p975 = scmp.lt.s32.totalorder %s972, 3
      %s976 = scalar_select %p975, %s972, 3
      %s977 = smul.addr %s974, 4
      %s978 = sadd.s32 %s976, %s977
      %s979 = smul.addr %s978, 8
      %s980 = scalar_lea.vmem %s7, %s979
      // Predicated region
      $region56: #{tpu_custom_call.1} parent=43 // pred_check
        %p981 = pneg %p219
      $region57: #{tpu_custom_call.1} parent=43 // pred_check_branch
        %983 = sbr.rel (%p981) target = $region59
      $region58: #{tpu_custom_call.1} parent=43 // pred_region
        %s984 = smul.u32 4, %s24
      $region59: #{tpu_custom_call.1} parent=43 // pred_fallthru
        _
      // Predicated region
      $region60: #{tpu_custom_call.1} parent=43 // pred_check
        %p985 = pneg %p247
      $region61: #{tpu_custom_call.1} parent=43 // pred_check_branch
        %987 = sbr.rel (%p985) target = $region63
      $region62: #{tpu_custom_call.1} parent=43 // pred_region
        %s988 = smul.u32 4, %s24
      $region63: #{tpu_custom_call.1} parent=43 // pred_fallthru
        _
    $region44: #{tpu_custom_call.1} parent=5 // pred_fallthru
      _
    %p989 = scmp.le.s32.totalorder 2, %s14
    // Predicated region
    $region64: #{tpu_custom_call.1} parent=5 // pred_check
      %p990 = pneg %p989
    $region65: #{tpu_custom_call.1} parent=5 // pred_check_branch
      %992 = sbr.rel (%p990) target = $region67
    $region66: #{tpu_custom_call.1} parent=5 // pred_region
      %s993 = ssub.s32 %s14, 2
      // Predicated region
      $region68: #{tpu_custom_call.1} parent=66 // pred_check
        %p994 = pneg %p225
      $region69: #{tpu_custom_call.1} parent=66 // pred_check_branch
        %996 = sbr.rel (%p994) target = $region71
      $region70: #{tpu_custom_call.1} parent=66 // pred_region
        %s997 = smul.u32 4, %s26
        %p998 = scmp.lt.s32.totalorder %s25, 1
        %s999 = scalar_select %p998, %s25, 1
        %p1000 = scmp.lt.s32.totalorder %s997, 3
        %s1001 = scalar_select %p1000, %s997, 3
        %s1002 = smul.addr %s999, 4
        %s1003 = sadd.s32 %s1001, %s1002
        %s1004 = smul.addr %s1003, 8
        %s1005 = scalar_lea.vmem %s6, %s1004
      $region71: #{tpu_custom_call.1} parent=66 // pred_fallthru
        _
      // Predicated region
      $region72: #{tpu_custom_call.1} parent=66 // pred_check
        %p1006 = pneg %p253
      $region73: #{tpu_custom_call.1} parent=66 // pred_check_branch
        %1008 = sbr.rel (%p1006) target = $region75
      $region74: #{tpu_custom_call.1} parent=66 // pred_region
        %s1009 = smul.u32 4, %s26
        %p1010 = scmp.lt.s32.totalorder %s25, 1
        %s1011 = scalar_select %p1010, %s25, 1
        %p1012 = scmp.lt.s32.totalorder %s1009, 3
        %s1013 = scalar_select %p1012, %s1009, 3
        %s1014 = smul.addr %s1011, 4
        %s1015 = sadd.s32 %s1013, %s1014
        %s1016 = smul.addr %s1015, 8
        %s1017 = scalar_lea.vmem %s7, %s1016
      $region75: #{tpu_custom_call.1} parent=66 // pred_fallthru
        _
    $region67: #{tpu_custom_call.1} parent=5 // pred_fallthru
      _
  $region6: #{tpu_custom_call.1} parent=0 // loop_footer
    %s18 = sadd.s32 1, %s14
  $region7: #{tpu_custom_call.1} parent=0 // loop_footer_branch
    %13 = sbr.rel target = $region3
  $region8: #{tpu_custom_call.1} parent=0 // loop_exit
    _

</llo_original>
